<compile_context>
chip_gen: v5e
topology: v5e:2x2
jax: 0.10.0
libtpu: 0.0.40
codegen_flags: <defaults>
</compile_context>

<pallas_src>
import functools
import math

import jax
import jax.numpy as jnp
from jax import lax
from jax.experimental import pallas as pl
from jax.experimental.pallas import tpu as pltpu

# ----------------------------- model config ---------------------------------
VOCAB_SIZE = 64
D_MODEL = 32
N_HEADS = 4
HEAD_DIM = D_MODEL // N_HEADS
N_LAYERS = 2
FFN_MULT = 4
BATCH = 2
SEQ = 8
LN_EPS = 1e-5


# ------------------------------ fused kernel --------------------------------
def _mpt_stack_kernel(
    ids_ref, wte_ref, bias_ref,
    ln1w_ref, ln1b_ref, wqkv_ref, wo_ref,
    ln2w_ref, ln2b_ref, wup_ref, wdown_ref,
    normfw_ref, normfb_ref,
    out_ref,
    h_scratch,
    *, eps, n_heads, head_dim, seq, batch, scale,
):
    layer = pl.program_id(0)
    n_layers = pl.num_programs(0)
    d_model = n_heads * head_dim
    m = batch * seq

    # ---- token embedding (layer 0 only): one-hot matmul on the MXU, stays in VMEM ----
    @pl.when(layer == 0)
    def _embed():
        vocab = wte_ref.shape[0]
        tok = lax.broadcasted_iota(jnp.int32, (m, vocab), 1)
        onehot = (ids_ref[...] == tok).astype(jnp.float32)          # (M, V)
        h_scratch[...] = jnp.dot(onehot, wte_ref[...],
                                 preferred_element_type=jnp.float32)

    h = h_scratch[...]                                              # (M, D) f32

    def layernorm(x, w_ref, b_ref):
        mu = jnp.mean(x, axis=-1, keepdims=True)
        xc = x - mu
        var = jnp.mean(xc * xc, axis=-1, keepdims=True)
        return xc * lax.rsqrt(var + eps) * w_ref[...] + b_ref[...]

    # ---- attention sub-block: ln1 -> fused qkv -> per-head causal ALiBi attn -> o_proj ----
    qkv = jnp.dot(layernorm(h, ln1w_ref, ln1b_ref), wqkv_ref[...],
                  preferred_element_type=jnp.float32)               # (M, 3D)
    wo = wo_ref[...]                                                # (D, D)

    attn_rows = []
    for b in range(batch):                                          # static, unrolled
        r0 = b * seq
        acc = jnp.zeros((seq, d_model), jnp.float32)
        for hh in range(n_heads):                                   # static, unrolled
            c0 = hh * head_dim
            q = qkv[r0:r0 + seq, c0:c0 + head_dim]
            k = qkv[r0:r0 + seq, d_model + c0:d_model + c0 + head_dim]
            v = qkv[r0:r0 + seq, 2 * d_model + c0:2 * d_model + c0 + head_dim]

            s = jnp.dot(q, k.T, preferred_element_type=jnp.float32) * scale
            s = s + bias_ref[hh]                                    # ALiBi + causal mask (precomputed)
            mmax = jnp.max(s, axis=-1, keepdims=True)
            p = jnp.exp(s - mmax)
            denom = jnp.sum(p, axis=-1, keepdims=True)
            o = jnp.dot(p, v, preferred_element_type=jnp.float32)
            o = o * pl.reciprocal(denom, approx=True)               # EUP, not VALU divide

            # Fold this head's slice of the output projection in directly so we never
            # materialize an 8-lane-wide per-head activation.
            acc = acc + jnp.dot(o, wo[c0:c0 + head_dim, :],
                                preferred_element_type=jnp.float32)
        attn_rows.append(acc)
    h = h + jnp.concatenate(attn_rows, axis=0)                      # residual add, (M, D)

    # ---- feed-forward sub-block: ln2 -> up -> gelu -> down ----
    up = jnp.dot(layernorm(h, ln2w_ref, ln2b_ref), wup_ref[...],
                 preferred_element_type=jnp.float32)                # (M, 4D)
    # TODO(synk): PyTorch nn.GELU() defaults to exact erf; tanh approximation used here.
    up = jax.nn.gelu(up, approximate=True)
    h = h + jnp.dot(up, wdown_ref[...], preferred_element_type=jnp.float32)

    h_scratch[...] = h

    # ---- final LayerNorm + single lane-dense HBM store on the last layer ----
    @pl.when(layer == n_layers - 1)
    def _final():
        out_ref[...] = layernorm(h, normfw_ref, normfb_ref).astype(out_ref.dtype)


# --------------------------- wrapper / glue ----------------------------------
def alibi_slopes(n_heads):
    # Standard ALiBi slopes for power-of-two head counts (as in MPT's gen_slopes).
    assert (n_heads & (n_heads - 1)) == 0
    return jnp.array(
        [2.0 ** (-8.0 * (i + 1) / n_heads) for i in range(n_heads)], dtype=jnp.float32
    )


def build_attn_bias(n_heads, seq):
    # ALiBi bias (softmax-equivalent relative-distance form) + causal mask, built once
    # per forward exactly like MPTModel's prepare_attention_mask / attn_bias.
    slopes = alibi_slopes(n_heads)                        # (H,)
    i = jnp.arange(seq)[:, None]
    j = jnp.arange(seq)[None, :]
    dist = (i - j).astype(jnp.float32)
    bias = -slopes[:, None, None] * dist[None]            # (H, S, S)
    bias = jnp.where((j <= i)[None], bias, jnp.float32(-1e30))
    return bias.astype(jnp.float32)


def mpt_model_forward(input_ids, params):
    B, S = input_ids.shape
    D = D_MODEL
    H = N_HEADS
    Dh = HEAD_DIM
    F = FFN_MULT * D
    L = params["wqkv"].shape[0]
    V = params["wte"].shape[0]
    M = B * S

    ids = input_ids.reshape(M, 1).astype(jnp.int32)
    attn_bias = build_attn_bias(H, S)                     # (H, S, S), constant per forward

    kernel = functools.partial(
        _mpt_stack_kernel,
        eps=LN_EPS, n_heads=H, head_dim=Dh, seq=S, batch=B,
        scale=1.0 / math.sqrt(Dh),
    )

    def resident(*shape):            # same VMEM block every layer (pinned)
        return pl.BlockSpec(shape, lambda l: (0,) * len(shape))

    def per_layer(*shape):           # per-layer weight block, streamed/double-buffered
        return pl.BlockSpec((None,) + shape, lambda l: (l,) + (0,) * len(shape))

    out2d = pl.pallas_call(
        kernel,
        out_shape=jax.ShapeDtypeStruct((M, D), params["wte"].dtype),
        grid=(L,),
        in_specs=[
            resident(M, 1),          # input ids
            resident(V, D),          # wte (resident)
            resident(H, S, S),       # ALiBi + causal bias (resident)
            per_layer(1, D),         # ln1_w
            per_layer(1, D),         # ln1_b
            per_layer(D, 3 * D),     # wqkv
            per_layer(D, D),         # wo
            per_layer(1, D),         # ln2_w
            per_layer(1, D),         # ln2_b
            per_layer(D, F),         # w_up
            per_layer(F, D),         # w_down
            resident(1, D),          # norm_f weight
            resident(1, D),          # norm_f bias
        ],
        out_specs=resident(M, D),
        scratch_shapes=[pltpu.VMEM((M, D), jnp.float32)],   # hidden state, lives across layers
        compiler_params=pltpu.CompilerParams(
            dimension_semantics=("arbitrary",)               # layers are sequential
        ),
    )(
        ids, params["wte"], attn_bias,
        params["ln1_w"], params["ln1_b"], params["wqkv"], params["wo"],
        params["ln2_w"], params["ln2_b"], params["w_up"], params["w_down"],
        params["normf_w"], params["normf_b"],
    )
    return out2d.reshape(B, S, D)                          # last_hidden_state


# --------------------------- parameter init ----------------------------------
def init_params(key):
    def nrm(k, shape, scale=0.02):
        return scale * jax.random.normal(k, shape, dtype=jnp.float32)

    L, D, F = N_LAYERS, D_MODEL, FFN_MULT * D_MODEL
    keys = jax.random.split(key, 5)
    return {
        "wte": nrm(keys[0], (VOCAB_SIZE, D)),
        "normf_w": jnp.ones((1, D), jnp.float32),
        "normf_b": jnp.zeros((1, D), jnp.float32),
        "ln1_w": jnp.ones((L, 1, D), jnp.float32),
        "ln1_b": jnp.zeros((L, 1, D), jnp.float32),
        "ln2_w": jnp.ones((L, 1, D), jnp.float32),
        "ln2_b": jnp.zeros((L, 1, D), jnp.float32),
        "wqkv": nrm(keys[1], (L, D, 3 * D)),
        "wo": nrm(keys[2], (L, D, D)),
        "w_up": nrm(keys[3], (L, D, F)),
        "w_down": nrm(keys[4], (L, F, D)),
    }


# --------------------------------- main ---------------------------------------
if __name__ == "__main__":
    key = jax.random.PRNGKey(0)
    pkey, ikey = jax.random.split(key)
    params = init_params(pkey)
    input_ids = jax.random.randint(ikey, (BATCH, SEQ), 0, VOCAB_SIZE, dtype=jnp.int32)

    out = mpt_model_forward(input_ids, params)
    out = jax.block_until_ready(out)
    assert out.shape == (BATCH, SEQ, D_MODEL)
    assert bool(jnp.all(jnp.isfinite(out)))
    print("KERNEL_OK")
</pallas_src>

<mosaic_0001>
module attributes {stable_mosaic.version = 11 : i64} {
  func.func @_mpt_stack_kernel(%arg0: i32, %arg1: memref<16x1xi32, #tpu.memory_space<vmem>>, %arg2: memref<64x32xf32, #tpu.memory_space<vmem>>, %arg3: memref<4x8x8xf32, #tpu.memory_space<vmem>>, %arg4: memref<1x1x32xf32, #tpu.memory_space<vmem>>, %arg5: memref<1x1x32xf32, #tpu.memory_space<vmem>>, %arg6: memref<1x32x96xf32, #tpu.memory_space<vmem>>, %arg7: memref<1x32x32xf32, #tpu.memory_space<vmem>>, %arg8: memref<1x1x32xf32, #tpu.memory_space<vmem>>, %arg9: memref<1x1x32xf32, #tpu.memory_space<vmem>>, %arg10: memref<1x32x128xf32, #tpu.memory_space<vmem>>, %arg11: memref<1x128x32xf32, #tpu.memory_space<vmem>>, %arg12: memref<1x32xf32, #tpu.memory_space<vmem>>, %arg13: memref<1x32xf32, #tpu.memory_space<vmem>>, %arg14: memref<16x32xf32, #tpu.memory_space<vmem>>, %arg15: memref<16x32xf32, #tpu.memory_space<vmem>>) attributes {dimension_semantics = [#tpu.dimension_semantics<arbitrary>], iteration_bounds = array<i64: 2>, scalar_prefetch = 0 : i64, scratch_operands = 1 : i64, tpu.core_type = #tpu.core_type<tc>, window_params = [{pipeline_mode = #tpu.pipeline_mode<synchronous>, transform_indices = @transform_0, window_bounds = array<i64: 16, 1>}, {pipeline_mode = #tpu.pipeline_mode<synchronous>, transform_indices = @transform_1, window_bounds = array<i64: 64, 32>}, {pipeline_mode = #tpu.pipeline_mode<synchronous>, transform_indices = @transform_2, window_bounds = array<i64: 4, 8, 8>}, {transform_indices = @transform_3, window_bounds = array<i64: 1, 1, 32>}, {transform_indices = @transform_4, window_bounds = array<i64: 1, 1, 32>}, {transform_indices = @transform_5, window_bounds = array<i64: 1, 32, 96>}, {transform_indices = @transform_6, window_bounds = array<i64: 1, 32, 32>}, {transform_indices = @transform_7, window_bounds = array<i64: 1, 1, 32>}, {transform_indices = @transform_8, window_bounds = array<i64: 1, 1, 32>}, {transform_indices = @transform_9, window_bounds = array<i64: 1, 32, 128>}, {transform_indices = @transform_10, window_bounds = array<i64: 1, 128, 32>}, {pipeline_mode = #tpu.pipeline_mode<synchronous>, transform_indices = @transform_11, window_bounds = array<i64: 1, 32>}, {pipeline_mode = #tpu.pipeline_mode<synchronous>, transform_indices = @transform_12, window_bounds = array<i64: 1, 32>}, {pipeline_mode = #tpu.pipeline_mode<synchronous>, transform_indices = @transform_13, window_bounds = array<i64: 16, 32>}]} {
    %c0_i32 = arith.constant 0 : i32
    %0 = arith.cmpi eq, %arg0, %c0_i32 : i32
    %1 = arith.extui %0 : i1 to i32
    %c0_i32_0 = arith.constant 0 : i32
    %2 = arith.cmpi ne, %1, %c0_i32_0 : i32
    scf.if %2 {
      %277 = tpu.iota {dimensions = array<i32: 1>} : vector<16x64xi32>
      %c0_116 = arith.constant 0 : index
      %c0_117 = arith.constant 0 : index
      %278 = vector.load %arg1[%c0_116, %c0_117] : memref<16x1xi32, #tpu.memory_space<vmem>>, vector<16x1xi32>
      %279 = vector.broadcast %278 : vector<16x1xi32> to vector<16x64xi32>
      %280 = arith.cmpi eq, %279, %277 : vector<16x64xi32>
      %281 = arith.extui %280 : vector<16x64xi1> to vector<16x64xi32>
      %282 = arith.sitofp %281 : vector<16x64xi32> to vector<16x64xf32>
      %c0_118 = arith.constant 0 : index
      %c0_119 = arith.constant 0 : index
      %283 = vector.load %arg2[%c0_118, %c0_119] : memref<64x32xf32, #tpu.memory_space<vmem>>, vector<64x32xf32>
      %cst_120 = arith.constant dense<0.000000e+00> : vector<16x32xf32>
      %284 = tpu.matmul %282, %283, %cst_120 {dimension_numbers = #tpu.dot_dimension_numbers<[1], [0], [0], [1], [0, 0, 1, 1], [], []>} : vector<16x64xf32>, vector<64x32xf32>, vector<16x32xf32> -> vector<16x32xf32>
      %c0_121 = arith.constant 0 : index
      %c0_122 = arith.constant 0 : index
      %285 = vector.load %arg15[%c0_121, %c0_122] : memref<16x32xf32, #tpu.memory_space<vmem>>, vector<16x32xf32>
      tpu.vector_store %arg15[%c0_121, %c0_122], %284 {strides = array<i32>} : memref<16x32xf32, #tpu.memory_space<vmem>>, vector<16x32xf32>,
    } else {
    }
    %c0 = arith.constant 0 : index
    %c0_1 = arith.constant 0 : index
    %3 = vector.load %arg15[%c0, %c0_1] : memref<16x32xf32, #tpu.memory_space<vmem>>, vector<16x32xf32>
    %cst = arith.constant dense<0.000000e+00> : vector<16xf32>
    %4 = vector.multi_reduction <add>, %3, %cst [1] : vector<16x32xf32> to vector<16xf32>
    %5 = vector.shape_cast %4 : vector<16xf32> to vector<16x1xf32>
    %cst_2 = arith.constant 3.200000e+01 : f32
    %6 = vector.broadcast %cst_2 : f32 to vector<16x1xf32>
    %7 = arith.divf %5, %6 : vector<16x1xf32>
    %8 = vector.broadcast %7 : vector<16x1xf32> to vector<16x32xf32>
    %9 = arith.subf %3, %8 : vector<16x32xf32>
    %10 = arith.mulf %9, %9 : vector<16x32xf32>
    %cst_3 = arith.constant dense<0.000000e+00> : vector<16xf32>
    %11 = vector.multi_reduction <add>, %10, %cst_3 [1] : vector<16x32xf32> to vector<16xf32>
    %12 = vector.shape_cast %11 : vector<16xf32> to vector<16x1xf32>
    %cst_4 = arith.constant 3.200000e+01 : f32
    %13 = vector.broadcast %cst_4 : f32 to vector<16x1xf32>
    %14 = arith.divf %12, %13 : vector<16x1xf32>
    %cst_5 = arith.constant 9.99999974E-6 : f32
    %15 = vector.broadcast %cst_5 : f32 to vector<16x1xf32>
    %16 = arith.addf %14, %15 : vector<16x1xf32>
    %17 = math.rsqrt %16 : vector<16x1xf32>
    %18 = vector.broadcast %17 : vector<16x1xf32> to vector<16x32xf32>
    %19 = arith.mulf %9, %18 : vector<16x32xf32>
    %c0_6 = arith.constant 0 : index
    %c0_7 = arith.constant 0 : index
    %c0_8 = arith.constant 0 : index
    %20 = vector.load %arg4[%c0_6, %c0_7, %c0_8] : memref<1x1x32xf32, #tpu.memory_space<vmem>>, vector<1x1x32xf32>
    %21 = vector.shape_cast %20 : vector<1x1x32xf32> to vector<1x32xf32>
    %22 = vector.broadcast %21 : vector<1x32xf32> to vector<16x32xf32>
    %23 = arith.mulf %19, %22 : vector<16x32xf32>
    %c0_9 = arith.constant 0 : index
    %c0_10 = arith.constant 0 : index
    %c0_11 = arith.constant 0 : index
    %24 = vector.load %arg5[%c0_9, %c0_10, %c0_11] : memref<1x1x32xf32, #tpu.memory_space<vmem>>, vector<1x1x32xf32>
    %25 = vector.shape_cast %24 : vector<1x1x32xf32> to vector<1x32xf32>
    %26 = vector.broadcast %25 : vector<1x32xf32> to vector<16x32xf32>
    %27 = arith.addf %23, %26 : vector<16x32xf32>
    %c0_12 = arith.constant 0 : index
    %c0_13 = arith.constant 0 : index
    %c0_14 = arith.constant 0 : index
    %28 = vector.load %arg6[%c0_12, %c0_13, %c0_14] : memref<1x32x96xf32, #tpu.memory_space<vmem>>, vector<1x32x96xf32>
    %29 = vector.shape_cast %28 : vector<1x32x96xf32> to vector<32x96xf32>
    %cst_15 = arith.constant dense<0.000000e+00> : vector<16x96xf32>
    %30 = tpu.matmul %27, %29, %cst_15 {dimension_numbers = #tpu.dot_dimension_numbers<[1], [0], [0], [1], [0, 0, 1, 1], [], []>} : vector<16x32xf32>, vector<32x96xf32>, vector<16x96xf32> -> vector<16x96xf32>
    %c0_16 = arith.constant 0 : index
    %c0_17 = arith.constant 0 : index
    %c0_18 = arith.constant 0 : index
    %31 = vector.load %arg7[%c0_16, %c0_17, %c0_18] : memref<1x32x32xf32, #tpu.memory_space<vmem>>, vector<1x32x32xf32>
    %32 = vector.shape_cast %31 : vector<1x32x32xf32> to vector<32x32xf32>
    %cst_19 = arith.constant 0.000000e+00 : f32
    %33 = vector.broadcast %cst_19 : f32 to vector<8x32xf32>
    %34 = vector.extract_strided_slice %30 {offsets = [0, 0], sizes = [8, 8], strides = [1, 1]} : vector<16x96xf32> to vector<8x8xf32>
    %35 = vector.extract_strided_slice %30 {offsets = [0, 32], sizes = [8, 8], strides = [1, 1]} : vector<16x96xf32> to vector<8x8xf32>
    %36 = vector.extract_strided_slice %30 {offsets = [0, 64], sizes = [8, 8], strides = [1, 1]} : vector<16x96xf32> to vector<8x8xf32>
    %37 = tpu.transpose %35, [1, 0] : vector<8x8xf32> -> vector<8x8xf32>
    %cst_20 = arith.constant dense<0.000000e+00> : vector<8x8xf32>
    %38 = tpu.matmul %34, %37, %cst_20 {dimension_numbers = #tpu.dot_dimension_numbers<[1], [0], [0], [1], [0, 0, 1, 1], [], []>} : vector<8x8xf32>, vector<8x8xf32>, vector<8x8xf32> -> vector<8x8xf32>
    %cst_21 = arith.constant 0.353553385 : f32
    %39 = vector.broadcast %cst_21 : f32 to vector<8x8xf32>
    %40 = arith.mulf %38, %39 : vector<8x8xf32>
    %c0_22 = arith.constant 0 : index
    %c0_23 = arith.constant 0 : index
    %c0_24 = arith.constant 0 : index
    %41 = vector.load %arg3[%c0_22, %c0_23, %c0_24] : memref<4x8x8xf32, #tpu.memory_space<vmem>>, vector<1x8x8xf32>
    %42 = vector.shape_cast %41 : vector<1x8x8xf32> to vector<8x8xf32>
    %43 = arith.addf %40, %42 : vector<8x8xf32>
    %cst_25 = arith.constant dense<0xFF800000> : vector<8xf32>
    %44 = vector.multi_reduction <maximumf>, %43, %cst_25 [1] : vector<8x8xf32> to vector<8xf32>
    %45 = vector.shape_cast %44 : vector<8xf32> to vector<8x1xf32>
    %46 = vector.broadcast %45 : vector<8x1xf32> to vector<8x8xf32>
    %47 = arith.subf %43, %46 : vector<8x8xf32>
    %48 = math.exp %47 : vector<8x8xf32>
    %cst_26 = arith.constant dense<0.000000e+00> : vector<8xf32>
    %49 = vector.multi_reduction <add>, %48, %cst_26 [1] : vector<8x8xf32> to vector<8xf32>
    %50 = vector.shape_cast %49 : vector<8xf32> to vector<8x1xf32>
    %cst_27 = arith.constant dense<0.000000e+00> : vector<8x8xf32>
    %51 = tpu.matmul %48, %36, %cst_27 {dimension_numbers = #tpu.dot_dimension_numbers<[1], [0], [0], [1], [0, 0, 1, 1], [], []>} : vector<8x8xf32>, vector<8x8xf32>, vector<8x8xf32> -> vector<8x8xf32>
    %52 = tpu.reciprocal %50 {approx = true} : vector<8x1xf32> -> vector<8x1xf32>
    %53 = vector.broadcast %52 : vector<8x1xf32> to vector<8x8xf32>
    %54 = arith.mulf %51, %53 : vector<8x8xf32>
    %55 = vector.extract_strided_slice %32 {offsets = [0, 0], sizes = [8, 32], strides = [1, 1]} : vector<32x32xf32> to vector<8x32xf32>
    %cst_28 = arith.constant dense<0.000000e+00> : vector<8x32xf32>
    %56 = tpu.matmul %54, %55, %cst_28 {dimension_numbers = #tpu.dot_dimension_numbers<[1], [0], [0], [1], [0, 0, 1, 1], [], []>} : vector<8x8xf32>, vector<8x32xf32>, vector<8x32xf32> -> vector<8x32xf32>
    %57 = arith.addf %33, %56 : vector<8x32xf32>
    %58 = vector.extract_strided_slice %30 {offsets = [0, 8], sizes = [8, 8], strides = [1, 1]} : vector<16x96xf32> to vector<8x8xf32>
    %59 = vector.extract_strided_slice %30 {offsets = [0, 40], sizes = [8, 8], strides = [1, 1]} : vector<16x96xf32> to vector<8x8xf32>
    %60 = vector.extract_strided_slice %30 {offsets = [0, 72], sizes = [8, 8], strides = [1, 1]} : vector<16x96xf32> to vector<8x8xf32>
    %61 = tpu.transpose %59, [1, 0] : vector<8x8xf32> -> vector<8x8xf32>
    %cst_29 = arith.constant dense<0.000000e+00> : vector<8x8xf32>
    %62 = tpu.matmul %58, %61, %cst_29 {dimension_numbers = #tpu.dot_dimension_numbers<[1], [0], [0], [1], [0, 0, 1, 1], [], []>} : vector<8x8xf32>, vector<8x8xf32>, vector<8x8xf32> -> vector<8x8xf32>
    %cst_30 = arith.constant 0.353553385 : f32
    %63 = vector.broadcast %cst_30 : f32 to vector<8x8xf32>
    %64 = arith.mulf %62, %63 : vector<8x8xf32>
    %c1 = arith.constant 1 : index
    %c0_31 = arith.constant 0 : index
    %c0_32 = arith.constant 0 : index
    %65 = vector.load %arg3[%c1, %c0_31, %c0_32] : memref<4x8x8xf32, #tpu.memory_space<vmem>>, vector<1x8x8xf32>
    %66 = vector.shape_cast %65 : vector<1x8x8xf32> to vector<8x8xf32>
    %67 = arith.addf %64, %66 : vector<8x8xf32>
    %cst_33 = arith.constant dense<0xFF800000> : vector<8xf32>
    %68 = vector.multi_reduction <maximumf>, %67, %cst_33 [1] : vector<8x8xf32> to vector<8xf32>
    %69 = vector.shape_cast %68 : vector<8xf32> to vector<8x1xf32>
    %70 = vector.broadcast %69 : vector<8x1xf32> to vector<8x8xf32>
    %71 = arith.subf %67, %70 : vector<8x8xf32>
    %72 = math.exp %71 : vector<8x8xf32>
    %cst_34 = arith.constant dense<0.000000e+00> : vector<8xf32>
    %73 = vector.multi_reduction <add>, %72, %cst_34 [1] : vector<8x8xf32> to vector<8xf32>
    %74 = vector.shape_cast %73 : vector<8xf32> to vector<8x1xf32>
    %cst_35 = arith.constant dense<0.000000e+00> : vector<8x8xf32>
    %75 = tpu.matmul %72, %60, %cst_35 {dimension_numbers = #tpu.dot_dimension_numbers<[1], [0], [0], [1], [0, 0, 1, 1], [], []>} : vector<8x8xf32>, vector<8x8xf32>, vector<8x8xf32> -> vector<8x8xf32>
    %76 = tpu.reciprocal %74 {approx = true} : vector<8x1xf32> -> vector<8x1xf32>
    %77 = vector.broadcast %76 : vector<8x1xf32> to vector<8x8xf32>
    %78 = arith.mulf %75, %77 : vector<8x8xf32>
    %79 = vector.extract_strided_slice %32 {offsets = [8, 0], sizes = [8, 32], strides = [1, 1]} : vector<32x32xf32> to vector<8x32xf32>
    %cst_36 = arith.constant dense<0.000000e+00> : vector<8x32xf32>
    %80 = tpu.matmul %78, %79, %cst_36 {dimension_numbers = #tpu.dot_dimension_numbers<[1], [0], [0], [1], [0, 0, 1, 1], [], []>} : vector<8x8xf32>, vector<8x32xf32>, vector<8x32xf32> -> vector<8x32xf32>
    %81 = arith.addf %57, %80 : vector<8x32xf32>
    %82 = vector.extract_strided_slice %30 {offsets = [0, 16], sizes = [8, 8], strides = [1, 1]} : vector<16x96xf32> to vector<8x8xf32>
    %83 = vector.extract_strided_slice %30 {offsets = [0, 48], sizes = [8, 8], strides = [1, 1]} : vector<16x96xf32> to vector<8x8xf32>
    %84 = vector.extract_strided_slice %30 {offsets = [0, 80], sizes = [8, 8], strides = [1, 1]} : vector<16x96xf32> to vector<8x8xf32>
    %85 = tpu.transpose %83, [1, 0] : vector<8x8xf32> -> vector<8x8xf32>
    %cst_37 = arith.constant dense<0.000000e+00> : vector<8x8xf32>
    %86 = tpu.matmul %82, %85, %cst_37 {dimension_numbers = #tpu.dot_dimension_numbers<[1], [0], [0], [1], [0, 0, 1, 1], [], []>} : vector<8x8xf32>, vector<8x8xf32>, vector<8x8xf32> -> vector<8x8xf32>
    %cst_38 = arith.constant 0.353553385 : f32
    %87 = vector.broadcast %cst_38 : f32 to vector<8x8xf32>
    %88 = arith.mulf %86, %87 : vector<8x8xf32>
    %c2 = arith.constant 2 : index
    %c0_39 = arith.constant 0 : index
    %c0_40 = arith.constant 0 : index
    %89 = vector.load %arg3[%c2, %c0_39, %c0_40] : memref<4x8x8xf32, #tpu.memory_space<vmem>>, vector<1x8x8xf32>
    %90 = vector.shape_cast %89 : vector<1x8x8xf32> to vector<8x8xf32>
    %91 = arith.addf %88, %90 : vector<8x8xf32>
    %cst_41 = arith.constant dense<0xFF800000> : vector<8xf32>
    %92 = vector.multi_reduction <maximumf>, %91, %cst_41 [1] : vector<8x8xf32> to vector<8xf32>
    %93 = vector.shape_cast %92 : vector<8xf32> to vector<8x1xf32>
    %94 = vector.broadcast %93 : vector<8x1xf32> to vector<8x8xf32>
    %95 = arith.subf %91, %94 : vector<8x8xf32>
    %96 = math.exp %95 : vector<8x8xf32>
    %cst_42 = arith.constant dense<0.000000e+00> : vector<8xf32>
    %97 = vector.multi_reduction <add>, %96, %cst_42 [1] : vector<8x8xf32> to vector<8xf32>
    %98 = vector.shape_cast %97 : vector<8xf32> to vector<8x1xf32>
    %cst_43 = arith.constant dense<0.000000e+00> : vector<8x8xf32>
    %99 = tpu.matmul %96, %84, %cst_43 {dimension_numbers = #tpu.dot_dimension_numbers<[1], [0], [0], [1], [0, 0, 1, 1], [], []>} : vector<8x8xf32>, vector<8x8xf32>, vector<8x8xf32> -> vector<8x8xf32>
    %100 = tpu.reciprocal %98 {approx = true} : vector<8x1xf32> -> vector<8x1xf32>
    %101 = vector.broadcast %100 : vector<8x1xf32> to vector<8x8xf32>
    %102 = arith.mulf %99, %101 : vector<8x8xf32>
    %103 = vector.extract_strided_slice %32 {offsets = [16, 0], sizes = [8, 32], strides = [1, 1]} : vector<32x32xf32> to vector<8x32xf32>
    %cst_44 = arith.constant dense<0.000000e+00> : vector<8x32xf32>
    %104 = tpu.matmul %102, %103, %cst_44 {dimension_numbers = #tpu.dot_dimension_numbers<[1], [0], [0], [1], [0, 0, 1, 1], [], []>} : vector<8x8xf32>, vector<8x32xf32>, vector<8x32xf32> -> vector<8x32xf32>
    %105 = arith.addf %81, %104 : vector<8x32xf32>
    %106 = vector.extract_strided_slice %30 {offsets = [0, 24], sizes = [8, 8], strides = [1, 1]} : vector<16x96xf32> to vector<8x8xf32>
    %107 = vector.extract_strided_slice %30 {offsets = [0, 56], sizes = [8, 8], strides = [1, 1]} : vector<16x96xf32> to vector<8x8xf32>
    %108 = vector.extract_strided_slice %30 {offsets = [0, 88], sizes = [8, 8], strides = [1, 1]} : vector<16x96xf32> to vector<8x8xf32>
    %109 = tpu.transpose %107, [1, 0] : vector<8x8xf32> -> vector<8x8xf32>
    %cst_45 = arith.constant dense<0.000000e+00> : vector<8x8xf32>
    %110 = tpu.matmul %106, %109, %cst_45 {dimension_numbers = #tpu.dot_dimension_numbers<[1], [0], [0], [1], [0, 0, 1, 1], [], []>} : vector<8x8xf32>, vector<8x8xf32>, vector<8x8xf32> -> vector<8x8xf32>
    %cst_46 = arith.constant 0.353553385 : f32
    %111 = vector.broadcast %cst_46 : f32 to vector<8x8xf32>
    %112 = arith.mulf %110, %111 : vector<8x8xf32>
    %c3 = arith.constant 3 : index
    %c0_47 = arith.constant 0 : index
    %c0_48 = arith.constant 0 : index
    %113 = vector.load %arg3[%c3, %c0_47, %c0_48] : memref<4x8x8xf32, #tpu.memory_space<vmem>>, vector<1x8x8xf32>
    %114 = vector.shape_cast %113 : vector<1x8x8xf32> to vector<8x8xf32>
    %115 = arith.addf %112, %114 : vector<8x8xf32>
    %cst_49 = arith.constant dense<0xFF800000> : vector<8xf32>
    %116 = vector.multi_reduction <maximumf>, %115, %cst_49 [1] : vector<8x8xf32> to vector<8xf32>
    %117 = vector.shape_cast %116 : vector<8xf32> to vector<8x1xf32>
    %118 = vector.broadcast %117 : vector<8x1xf32> to vector<8x8xf32>
    %119 = arith.subf %115, %118 : vector<8x8xf32>
    %120 = math.exp %119 : vector<8x8xf32>
    %cst_50 = arith.constant dense<0.000000e+00> : vector<8xf32>
    %121 = vector.multi_reduction <add>, %120, %cst_50 [1] : vector<8x8xf32> to vector<8xf32>
    %122 = vector.shape_cast %121 : vector<8xf32> to vector<8x1xf32>
    %cst_51 = arith.constant dense<0.000000e+00> : vector<8x8xf32>
    %123 = tpu.matmul %120, %108, %cst_51 {dimension_numbers = #tpu.dot_dimension_numbers<[1], [0], [0], [1], [0, 0, 1, 1], [], []>} : vector<8x8xf32>, vector<8x8xf32>, vector<8x8xf32> -> vector<8x8xf32>
    %124 = tpu.reciprocal %122 {approx = true} : vector<8x1xf32> -> vector<8x1xf32>
    %125 = vector.broadcast %124 : vector<8x1xf32> to vector<8x8xf32>
    %126 = arith.mulf %123, %125 : vector<8x8xf32>
    %127 = vector.extract_strided_slice %32 {offsets = [24, 0], sizes = [8, 32], strides = [1, 1]} : vector<32x32xf32> to vector<8x32xf32>
    %cst_52 = arith.constant dense<0.000000e+00> : vector<8x32xf32>
    %128 = tpu.matmul %126, %127, %cst_52 {dimension_numbers = #tpu.dot_dimension_numbers<[1], [0], [0], [1], [0, 0, 1, 1], [], []>} : vector<8x8xf32>, vector<8x32xf32>, vector<8x32xf32> -> vector<8x32xf32>
    %129 = arith.addf %105, %128 : vector<8x32xf32>
    %cst_53 = arith.constant 0.000000e+00 : f32
    %130 = vector.broadcast %cst_53 : f32 to vector<8x32xf32>
    %131 = vector.extract_strided_slice %30 {offsets = [8, 0], sizes = [8, 8], strides = [1, 1]} : vector<16x96xf32> to vector<8x8xf32>
    %132 = vector.extract_strided_slice %30 {offsets = [8, 32], sizes = [8, 8], strides = [1, 1]} : vector<16x96xf32> to vector<8x8xf32>
    %133 = vector.extract_strided_slice %30 {offsets = [8, 64], sizes = [8, 8], strides = [1, 1]} : vector<16x96xf32> to vector<8x8xf32>
    %134 = tpu.transpose %132, [1, 0] : vector<8x8xf32> -> vector<8x8xf32>
    %cst_54 = arith.constant dense<0.000000e+00> : vector<8x8xf32>
    %135 = tpu.matmul %131, %134, %cst_54 {dimension_numbers = #tpu.dot_dimension_numbers<[1], [0], [0], [1], [0, 0, 1, 1], [], []>} : vector<8x8xf32>, vector<8x8xf32>, vector<8x8xf32> -> vector<8x8xf32>
    %cst_55 = arith.constant 0.353553385 : f32
    %136 = vector.broadcast %cst_55 : f32 to vector<8x8xf32>
    %137 = arith.mulf %135, %136 : vector<8x8xf32>
    %c0_56 = arith.constant 0 : index
    %c0_57 = arith.constant 0 : index
    %c0_58 = arith.constant 0 : index
    %138 = vector.load %arg3[%c0_56, %c0_57, %c0_58] : memref<4x8x8xf32, #tpu.memory_space<vmem>>, vector<1x8x8xf32>
    %139 = vector.shape_cast %138 : vector<1x8x8xf32> to vector<8x8xf32>
    %140 = arith.addf %137, %139 : vector<8x8xf32>
    %cst_59 = arith.constant dense<0xFF800000> : vector<8xf32>
    %141 = vector.multi_reduction <maximumf>, %140, %cst_59 [1] : vector<8x8xf32> to vector<8xf32>
    %142 = vector.shape_cast %141 : vector<8xf32> to vector<8x1xf32>
    %143 = vector.broadcast %142 : vector<8x1xf32> to vector<8x8xf32>
    %144 = arith.subf %140, %143 : vector<8x8xf32>
    %145 = math.exp %144 : vector<8x8xf32>
    %cst_60 = arith.constant dense<0.000000e+00> : vector<8xf32>
    %146 = vector.multi_reduction <add>, %145, %cst_60 [1] : vector<8x8xf32> to vector<8xf32>
    %147 = vector.shape_cast %146 : vector<8xf32> to vector<8x1xf32>
    %cst_61 = arith.constant dense<0.000000e+00> : vector<8x8xf32>
    %148 = tpu.matmul %145, %133, %cst_61 {dimension_numbers = #tpu.dot_dimension_numbers<[1], [0], [0], [1], [0, 0, 1, 1], [], []>} : vector<8x8xf32>, vector<8x8xf32>, vector<8x8xf32> -> vector<8x8xf32>
    %149 = tpu.reciprocal %147 {approx = true} : vector<8x1xf32> -> vector<8x1xf32>
    %150 = vector.broadcast %149 : vector<8x1xf32> to vector<8x8xf32>
    %151 = arith.mulf %148, %150 : vector<8x8xf32>
    %152 = vector.extract_strided_slice %32 {offsets = [0, 0], sizes = [8, 32], strides = [1, 1]} : vector<32x32xf32> to vector<8x32xf32>
    %cst_62 = arith.constant dense<0.000000e+00> : vector<8x32xf32>
    %153 = tpu.matmul %151, %152, %cst_62 {dimension_numbers = #tpu.dot_dimension_numbers<[1], [0], [0], [1], [0, 0, 1, 1], [], []>} : vector<8x8xf32>, vector<8x32xf32>, vector<8x32xf32> -> vector<8x32xf32>
    %154 = arith.addf %130, %153 : vector<8x32xf32>
    %155 = vector.extract_strided_slice %30 {offsets = [8, 8], sizes = [8, 8], strides = [1, 1]} : vector<16x96xf32> to vector<8x8xf32>
    %156 = vector.extract_strided_slice %30 {offsets = [8, 40], sizes = [8, 8], strides = [1, 1]} : vector<16x96xf32> to vector<8x8xf32>
    %157 = vector.extract_strided_slice %30 {offsets = [8, 72], sizes = [8, 8], strides = [1, 1]} : vector<16x96xf32> to vector<8x8xf32>
    %158 = tpu.transpose %156, [1, 0] : vector<8x8xf32> -> vector<8x8xf32>
    %cst_63 = arith.constant dense<0.000000e+00> : vector<8x8xf32>
    %159 = tpu.matmul %155, %158, %cst_63 {dimension_numbers = #tpu.dot_dimension_numbers<[1], [0], [0], [1], [0, 0, 1, 1], [], []>} : vector<8x8xf32>, vector<8x8xf32>, vector<8x8xf32> -> vector<8x8xf32>
    %cst_64 = arith.constant 0.353553385 : f32
    %160 = vector.broadcast %cst_64 : f32 to vector<8x8xf32>
    %161 = arith.mulf %159, %160 : vector<8x8xf32>
    %c1_65 = arith.constant 1 : index
    %c0_66 = arith.constant 0 : index
    %c0_67 = arith.constant 0 : index
    %162 = vector.load %arg3[%c1_65, %c0_66, %c0_67] : memref<4x8x8xf32, #tpu.memory_space<vmem>>, vector<1x8x8xf32>
    %163 = vector.shape_cast %162 : vector<1x8x8xf32> to vector<8x8xf32>
    %164 = arith.addf %161, %163 : vector<8x8xf32>
    %cst_68 = arith.constant dense<0xFF800000> : vector<8xf32>
    %165 = vector.multi_reduction <maximumf>, %164, %cst_68 [1] : vector<8x8xf32> to vector<8xf32>
    %166 = vector.shape_cast %165 : vector<8xf32> to vector<8x1xf32>
    %167 = vector.broadcast %166 : vector<8x1xf32> to vector<8x8xf32>
    %168 = arith.subf %164, %167 : vector<8x8xf32>
    %169 = math.exp %168 : vector<8x8xf32>
    %cst_69 = arith.constant dense<0.000000e+00> : vector<8xf32>
    %170 = vector.multi_reduction <add>, %169, %cst_69 [1] : vector<8x8xf32> to vector<8xf32>
    %171 = vector.shape_cast %170 : vector<8xf32> to vector<8x1xf32>
    %cst_70 = arith.constant dense<0.000000e+00> : vector<8x8xf32>
    %172 = tpu.matmul %169, %157, %cst_70 {dimension_numbers = #tpu.dot_dimension_numbers<[1], [0], [0], [1], [0, 0, 1, 1], [], []>} : vector<8x8xf32>, vector<8x8xf32>, vector<8x8xf32> -> vector<8x8xf32>
    %173 = tpu.reciprocal %171 {approx = true} : vector<8x1xf32> -> vector<8x1xf32>
    %174 = vector.broadcast %173 : vector<8x1xf32> to vector<8x8xf32>
    %175 = arith.mulf %172, %174 : vector<8x8xf32>
    %176 = vector.extract_strided_slice %32 {offsets = [8, 0], sizes = [8, 32], strides = [1, 1]} : vector<32x32xf32> to vector<8x32xf32>
    %cst_71 = arith.constant dense<0.000000e+00> : vector<8x32xf32>
    %177 = tpu.matmul %175, %176, %cst_71 {dimension_numbers = #tpu.dot_dimension_numbers<[1], [0], [0], [1], [0, 0, 1, 1], [], []>} : vector<8x8xf32>, vector<8x32xf32>, vector<8x32xf32> -> vector<8x32xf32>
    %178 = arith.addf %154, %177 : vector<8x32xf32>
    %179 = vector.extract_strided_slice %30 {offsets = [8, 16], sizes = [8, 8], strides = [1, 1]} : vector<16x96xf32> to vector<8x8xf32>
    %180 = vector.extract_strided_slice %30 {offsets = [8, 48], sizes = [8, 8], strides = [1, 1]} : vector<16x96xf32> to vector<8x8xf32>
    %181 = vector.extract_strided_slice %30 {offsets = [8, 80], sizes = [8, 8], strides = [1, 1]} : vector<16x96xf32> to vector<8x8xf32>
    %182 = tpu.transpose %180, [1, 0] : vector<8x8xf32> -> vector<8x8xf32>
    %cst_72 = arith.constant dense<0.000000e+00> : vector<8x8xf32>
    %183 = tpu.matmul %179, %182, %cst_72 {dimension_numbers = #tpu.dot_dimension_numbers<[1], [0], [0], [1], [0, 0, 1, 1], [], []>} : vector<8x8xf32>, vector<8x8xf32>, vector<8x8xf32> -> vector<8x8xf32>
    %cst_73 = arith.constant 0.353553385 : f32
    %184 = vector.broadcast %cst_73 : f32 to vector<8x8xf32>
    %185 = arith.mulf %183, %184 : vector<8x8xf32>
    %c2_74 = arith.constant 2 : index
    %c0_75 = arith.constant 0 : index
    %c0_76 = arith.constant 0 : index
    %186 = vector.load %arg3[%c2_74, %c0_75, %c0_76] : memref<4x8x8xf32, #tpu.memory_space<vmem>>, vector<1x8x8xf32>
    %187 = vector.shape_cast %186 : vector<1x8x8xf32> to vector<8x8xf32>
    %188 = arith.addf %185, %187 : vector<8x8xf32>
    %cst_77 = arith.constant dense<0xFF800000> : vector<8xf32>
    %189 = vector.multi_reduction <maximumf>, %188, %cst_77 [1] : vector<8x8xf32> to vector<8xf32>
    %190 = vector.shape_cast %189 : vector<8xf32> to vector<8x1xf32>
    %191 = vector.broadcast %190 : vector<8x1xf32> to vector<8x8xf32>
    %192 = arith.subf %188, %191 : vector<8x8xf32>
    %193 = math.exp %192 : vector<8x8xf32>
    %cst_78 = arith.constant dense<0.000000e+00> : vector<8xf32>
    %194 = vector.multi_reduction <add>, %193, %cst_78 [1] : vector<8x8xf32> to vector<8xf32>
    %195 = vector.shape_cast %194 : vector<8xf32> to vector<8x1xf32>
    %cst_79 = arith.constant dense<0.000000e+00> : vector<8x8xf32>
    %196 = tpu.matmul %193, %181, %cst_79 {dimension_numbers = #tpu.dot_dimension_numbers<[1], [0], [0], [1], [0, 0, 1, 1], [], []>} : vector<8x8xf32>, vector<8x8xf32>, vector<8x8xf32> -> vector<8x8xf32>
    %197 = tpu.reciprocal %195 {approx = true} : vector<8x1xf32> -> vector<8x1xf32>
    %198 = vector.broadcast %197 : vector<8x1xf32> to vector<8x8xf32>
    %199 = arith.mulf %196, %198 : vector<8x8xf32>
    %200 = vector.extract_strided_slice %32 {offsets = [16, 0], sizes = [8, 32], strides = [1, 1]} : vector<32x32xf32> to vector<8x32xf32>
    %cst_80 = arith.constant dense<0.000000e+00> : vector<8x32xf32>
    %201 = tpu.matmul %199, %200, %cst_80 {dimension_numbers = #tpu.dot_dimension_numbers<[1], [0], [0], [1], [0, 0, 1, 1], [], []>} : vector<8x8xf32>, vector<8x32xf32>, vector<8x32xf32> -> vector<8x32xf32>
    %202 = arith.addf %178, %201 : vector<8x32xf32>
    %203 = vector.extract_strided_slice %30 {offsets = [8, 24], sizes = [8, 8], strides = [1, 1]} : vector<16x96xf32> to vector<8x8xf32>
    %204 = vector.extract_strided_slice %30 {offsets = [8, 56], sizes = [8, 8], strides = [1, 1]} : vector<16x96xf32> to vector<8x8xf32>
    %205 = vector.extract_strided_slice %30 {offsets = [8, 88], sizes = [8, 8], strides = [1, 1]} : vector<16x96xf32> to vector<8x8xf32>
    %206 = tpu.transpose %204, [1, 0] : vector<8x8xf32> -> vector<8x8xf32>
    %cst_81 = arith.constant dense<0.000000e+00> : vector<8x8xf32>
    %207 = tpu.matmul %203, %206, %cst_81 {dimension_numbers = #tpu.dot_dimension_numbers<[1], [0], [0], [1], [0, 0, 1, 1], [], []>} : vector<8x8xf32>, vector<8x8xf32>, vector<8x8xf32> -> vector<8x8xf32>
    %cst_82 = arith.constant 0.353553385 : f32
    %208 = vector.broadcast %cst_82 : f32 to vector<8x8xf32>
    %209 = arith.mulf %207, %208 : vector<8x8xf32>
    %c3_83 = arith.constant 3 : index
    %c0_84 = arith.constant 0 : index
    %c0_85 = arith.constant 0 : index
    %210 = vector.load %arg3[%c3_83, %c0_84, %c0_85] : memref<4x8x8xf32, #tpu.memory_space<vmem>>, vector<1x8x8xf32>
    %211 = vector.shape_cast %210 : vector<1x8x8xf32> to vector<8x8xf32>
    %212 = arith.addf %209, %211 : vector<8x8xf32>
    %cst_86 = arith.constant dense<0xFF800000> : vector<8xf32>
    %213 = vector.multi_reduction <maximumf>, %212, %cst_86 [1] : vector<8x8xf32> to vector<8xf32>
    %214 = vector.shape_cast %213 : vector<8xf32> to vector<8x1xf32>
    %215 = vector.broadcast %214 : vector<8x1xf32> to vector<8x8xf32>
    %216 = arith.subf %212, %215 : vector<8x8xf32>
    %217 = math.exp %216 : vector<8x8xf32>
    %cst_87 = arith.constant dense<0.000000e+00> : vector<8xf32>
    %218 = vector.multi_reduction <add>, %217, %cst_87 [1] : vector<8x8xf32> to vector<8xf32>
    %219 = vector.shape_cast %218 : vector<8xf32> to vector<8x1xf32>
    %cst_88 = arith.constant dense<0.000000e+00> : vector<8x8xf32>
    %220 = tpu.matmul %217, %205, %cst_88 {dimension_numbers = #tpu.dot_dimension_numbers<[1], [0], [0], [1], [0, 0, 1, 1], [], []>} : vector<8x8xf32>, vector<8x8xf32>, vector<8x8xf32> -> vector<8x8xf32>
    %221 = tpu.reciprocal %219 {approx = true} : vector<8x1xf32> -> vector<8x1xf32>
    %222 = vector.broadcast %221 : vector<8x1xf32> to vector<8x8xf32>
    %223 = arith.mulf %220, %222 : vector<8x8xf32>
    %224 = vector.extract_strided_slice %32 {offsets = [24, 0], sizes = [8, 32], strides = [1, 1]} : vector<32x32xf32> to vector<8x32xf32>
    %cst_89 = arith.constant dense<0.000000e+00> : vector<8x32xf32>
    %225 = tpu.matmul %223, %224, %cst_89 {dimension_numbers = #tpu.dot_dimension_numbers<[1], [0], [0], [1], [0, 0, 1, 1], [], []>} : vector<8x8xf32>, vector<8x32xf32>, vector<8x32xf32> -> vector<8x32xf32>
    %226 = arith.addf %202, %225 : vector<8x32xf32>
    %227 = tpu.concatenate %129, %226 in 0 : vector<8x32xf32>, vector<8x32xf32> -> vector<16x32xf32>
    %228 = arith.addf %3, %227 : vector<16x32xf32>
    %cst_90 = arith.constant dense<0.000000e+00> : vector<16xf32>
    %229 = vector.multi_reduction <add>, %228, %cst_90 [1] : vector<16x32xf32> to vector<16xf32>
    %230 = vector.shape_cast %229 : vector<16xf32> to vector<16x1xf32>
    %cst_91 = arith.constant 3.200000e+01 : f32
    %231 = vector.broadcast %cst_91 : f32 to vector<16x1xf32>
    %232 = arith.divf %230, %231 : vector<16x1xf32>
    %233 = vector.broadcast %232 : vector<16x1xf32> to vector<16x32xf32>
    %234 = arith.subf %228, %233 : vector<16x32xf32>
    %235 = arith.mulf %234, %234 : vector<16x32xf32>
    %cst_92 = arith.constant dense<0.000000e+00> : vector<16xf32>
    %236 = vector.multi_reduction <add>, %235, %cst_92 [1] : vector<16x32xf32> to vector<16xf32>
    %237 = vector.shape_cast %236 : vector<16xf32> to vector<16x1xf32>
    %cst_93 = arith.constant 3.200000e+01 : f32
    %238 = vector.broadcast %cst_93 : f32 to vector<16x1xf32>
    %239 = arith.divf %237, %238 : vector<16x1xf32>
    %cst_94 = arith.constant 9.99999974E-6 : f32
    %240 = vector.broadcast %cst_94 : f32 to vector<16x1xf32>
    %241 = arith.addf %239, %240 : vector<16x1xf32>
    %242 = math.rsqrt %241 : vector<16x1xf32>
    %243 = vector.broadcast %242 : vector<16x1xf32> to vector<16x32xf32>
    %244 = arith.mulf %234, %243 : vector<16x32xf32>
    %c0_95 = arith.constant 0 : index
    %c0_96 = arith.constant 0 : index
    %c0_97 = arith.constant 0 : index
    %245 = vector.load %arg8[%c0_95, %c0_96, %c0_97] : memref<1x1x32xf32, #tpu.memory_space<vmem>>, vector<1x1x32xf32>
    %246 = vector.shape_cast %245 : vector<1x1x32xf32> to vector<1x32xf32>
    %247 = vector.broadcast %246 : vector<1x32xf32> to vector<16x32xf32>
    %248 = arith.mulf %244, %247 : vector<16x32xf32>
    %c0_98 = arith.constant 0 : index
    %c0_99 = arith.constant 0 : index
    %c0_100 = arith.constant 0 : index
    %249 = vector.load %arg9[%c0_98, %c0_99, %c0_100] : memref<1x1x32xf32, #tpu.memory_space<vmem>>, vector<1x1x32xf32>
    %250 = vector.shape_cast %249 : vector<1x1x32xf32> to vector<1x32xf32>
    %251 = vector.broadcast %250 : vector<1x32xf32> to vector<16x32xf32>
    %252 = arith.addf %248, %251 : vector<16x32xf32>
    %c0_101 = arith.constant 0 : index
    %c0_102 = arith.constant 0 : index
    %c0_103 = arith.constant 0 : index
    %253 = vector.load %arg10[%c0_101, %c0_102, %c0_103] : memref<1x32x128xf32, #tpu.memory_space<vmem>>, vector<1x32x128xf32>
    %254 = vector.shape_cast %253 : vector<1x32x128xf32> to vector<32x128xf32>
    %cst_104 = arith.constant dense<0.000000e+00> : vector<16x128xf32>
    %255 = tpu.matmul %252, %254, %cst_104 {dimension_numbers = #tpu.dot_dimension_numbers<[1], [0], [0], [1], [0, 0, 1, 1], [], []>} : vector<16x32xf32>, vector<32x128xf32>, vector<16x128xf32> -> vector<16x128xf32>
    %256 = arith.mulf %255, %255 : vector<16x128xf32>
    %257 = arith.mulf %255, %256 : vector<16x128xf32>
    %cst_105 = arith.constant 4.471500e-02 : f32
    %258 = vector.broadcast %cst_105 : f32 to vector<16x128xf32>
    %259 = arith.mulf %258, %257 : vector<16x128xf32>
    %260 = arith.addf %255, %259 : vector<16x128xf32>
    %cst_106 = arith.constant 0.797884583 : f32
    %261 = vector.broadcast %cst_106 : f32 to vector<16x128xf32>
    %262 = arith.mulf %261, %260 : vector<16x128xf32>
    %263 = math.tanh %262 : vector<16x128xf32>
    %cst_107 = arith.constant 1.000000e+00 : f32
    %264 = vector.broadcast %cst_107 : f32 to vector<16x128xf32>
    %265 = arith.addf %264, %263 : vector<16x128xf32>
    %cst_108 = arith.constant 5.000000e-01 : f32
    %266 = vector.broadcast %cst_108 : f32 to vector<16x128xf32>
    %267 = arith.mulf %266, %265 : vector<16x128xf32>
    %268 = arith.mulf %255, %267 : vector<16x128xf32>
    %c0_109 = arith.constant 0 : index
    %c0_110 = arith.constant 0 : index
    %c0_111 = arith.constant 0 : index
    %269 = vector.load %arg11[%c0_109, %c0_110, %c0_111] : memref<1x128x32xf32, #tpu.memory_space<vmem>>, vector<1x128x32xf32>
    %270 = vector.shape_cast %269 : vector<1x128x32xf32> to vector<128x32xf32>
    %cst_112 = arith.constant dense<0.000000e+00> : vector<16x32xf32>
    %271 = tpu.matmul %268, %270, %cst_112 {dimension_numbers = #tpu.dot_dimension_numbers<[1], [0], [0], [1], [0, 0, 1, 1], [], []>} : vector<16x128xf32>, vector<128x32xf32>, vector<16x32xf32> -> vector<16x32xf32>
    %272 = arith.addf %228, %271 : vector<16x32xf32>
    %c0_113 = arith.constant 0 : index
    %c0_114 = arith.constant 0 : index
    %273 = vector.load %arg15[%c0_113, %c0_114] : memref<16x32xf32, #tpu.memory_space<vmem>>, vector<16x32xf32>
    tpu.vector_store %arg15[%c0_113, %c0_114], %272 {strides = array<i32>} : memref<16x32xf32, #tpu.memory_space<vmem>>, vector<16x32xf32>,
    %c1_i32 = arith.constant 1 : i32
    %274 = arith.cmpi eq, %arg0, %c1_i32 : i32
    %275 = arith.extui %274 : i1 to i32
    %c0_i32_115 = arith.constant 0 : i32
    %276 = arith.cmpi ne, %275, %c0_i32_115 : i32
    scf.if %276 {
      %cst_116 = arith.constant dense<0.000000e+00> : vector<16xf32>
      %277 = vector.multi_reduction <add>, %272, %cst_116 [1] : vector<16x32xf32> to vector<16xf32>
      %278 = vector.shape_cast %277 : vector<16xf32> to vector<16x1xf32>
      %cst_117 = arith.constant 3.200000e+01 : f32
      %279 = vector.broadcast %cst_117 : f32 to vector<16x1xf32>
      %280 = arith.divf %278, %279 : vector<16x1xf32>
      %281 = vector.broadcast %280 : vector<16x1xf32> to vector<16x32xf32>
      %282 = arith.subf %272, %281 : vector<16x32xf32>
      %283 = arith.mulf %282, %282 : vector<16x32xf32>
      %cst_118 = arith.constant dense<0.000000e+00> : vector<16xf32>
      %284 = vector.multi_reduction <add>, %283, %cst_118 [1] : vector<16x32xf32> to vector<16xf32>
      %285 = vector.shape_cast %284 : vector<16xf32> to vector<16x1xf32>
      %cst_119 = arith.constant 3.200000e+01 : f32
      %286 = vector.broadcast %cst_119 : f32 to vector<16x1xf32>
      %287 = arith.divf %285, %286 : vector<16x1xf32>
      %cst_120 = arith.constant 9.99999974E-6 : f32
      %288 = vector.broadcast %cst_120 : f32 to vector<16x1xf32>
      %289 = arith.addf %287, %288 : vector<16x1xf32>
      %290 = math.rsqrt %289 : vector<16x1xf32>
      %291 = vector.broadcast %290 : vector<16x1xf32> to vector<16x32xf32>
      %292 = arith.mulf %282, %291 : vector<16x32xf32>
      %c0_121 = arith.constant 0 : index
      %c0_122 = arith.constant 0 : index
      %293 = vector.load %arg12[%c0_121, %c0_122] : memref<1x32xf32, #tpu.memory_space<vmem>>, vector<1x32xf32>
      %294 = vector.broadcast %293 : vector<1x32xf32> to vector<16x32xf32>
      %295 = arith.mulf %292, %294 : vector<16x32xf32>
      %c0_123 = arith.constant 0 : index
      %c0_124 = arith.constant 0 : index
      %296 = vector.load %arg13[%c0_123, %c0_124] : memref<1x32xf32, #tpu.memory_space<vmem>>, vector<1x32xf32>
      %297 = vector.broadcast %296 : vector<1x32xf32> to vector<16x32xf32>
      %298 = arith.addf %295, %297 : vector<16x32xf32>
      %c0_125 = arith.constant 0 : index
      %c0_126 = arith.constant 0 : index
      %299 = vector.load %arg14[%c0_125, %c0_126] : memref<16x32xf32, #tpu.memory_space<vmem>>, vector<16x32xf32>
      tpu.vector_store %arg14[%c0_125, %c0_126], %298 {strides = array<i32>} : memref<16x32xf32, #tpu.memory_space<vmem>>, vector<16x32xf32>,
    } else {
    }
    return
  }
  func.func @transform_0(%arg0: i32) -> (i32, i32) {
    %c0_i32 = arith.constant 0 : i32
    %c0_i32_0 = arith.constant 0 : i32
    %c0_i32_1 = arith.constant 0 : i32
    return %c0_i32, %c0_i32_0 : i32, i32
  }
  func.func @transform_1(%arg0: i32) -> (i32, i32) {
    %c0_i32 = arith.constant 0 : i32
    %c0_i32_0 = arith.constant 0 : i32
    %c0_i32_1 = arith.constant 0 : i32
    return %c0_i32, %c0_i32_0 : i32, i32
  }
  func.func @transform_2(%arg0: i32) -> (i32, i32, i32) {
    %c0_i32 = arith.constant 0 : i32
    %c0_i32_0 = arith.constant 0 : i32
    %c0_i32_1 = arith.constant 0 : i32
    %c0_i32_2 = arith.constant 0 : i32
    return %c0_i32, %c0_i32_0, %c0_i32_1 : i32, i32, i32
  }
  func.func @transform_3(%arg0: i32) -> (i32, i32, i32) {
    %c0_i32 = arith.constant 0 : i32
    %c0_i32_0 = arith.constant 0 : i32
    %c0_i32_1 = arith.constant 0 : i32
    return %arg0, %c0_i32, %c0_i32_0 : i32, i32, i32
  }
  func.func @transform_4(%arg0: i32) -> (i32, i32, i32) {
    %c0_i32 = arith.constant 0 : i32
    %c0_i32_0 = arith.constant 0 : i32
    %c0_i32_1 = arith.constant 0 : i32
    return %arg0, %c0_i32, %c0_i32_0 : i32, i32, i32
  }
  func.func @transform_5(%arg0: i32) -> (i32, i32, i32) {
    %c0_i32 = arith.constant 0 : i32
    %c0_i32_0 = arith.constant 0 : i32
    %c0_i32_1 = arith.constant 0 : i32
    return %arg0, %c0_i32, %c0_i32_0 : i32, i32, i32
  }
  func.func @transform_6(%arg0: i32) -> (i32, i32, i32) {
    %c0_i32 = arith.constant 0 : i32
    %c0_i32_0 = arith.constant 0 : i32
    %c0_i32_1 = arith.constant 0 : i32
    return %arg0, %c0_i32, %c0_i32_0 : i32, i32, i32
  }
  func.func @transform_7(%arg0: i32) -> (i32, i32, i32) {
    %c0_i32 = arith.constant 0 : i32
    %c0_i32_0 = arith.constant 0 : i32
    %c0_i32_1 = arith.constant 0 : i32
    return %arg0, %c0_i32, %c0_i32_0 : i32, i32, i32
  }
  func.func @transform_8(%arg0: i32) -> (i32, i32, i32) {
    %c0_i32 = arith.constant 0 : i32
    %c0_i32_0 = arith.constant 0 : i32
    %c0_i32_1 = arith.constant 0 : i32
    return %arg0, %c0_i32, %c0_i32_0 : i32, i32, i32
  }
  func.func @transform_9(%arg0: i32) -> (i32, i32, i32) {
    %c0_i32 = arith.constant 0 : i32
    %c0_i32_0 = arith.constant 0 : i32
    %c0_i32_1 = arith.constant 0 : i32
    return %arg0, %c0_i32, %c0_i32_0 : i32, i32, i32
  }
  func.func @transform_10(%arg0: i32) -> (i32, i32, i32) {
    %c0_i32 = arith.constant 0 : i32
    %c0_i32_0 = arith.constant 0 : i32
    %c0_i32_1 = arith.constant 0 : i32
    return %arg0, %c0_i32, %c0_i32_0 : i32, i32, i32
  }
  func.func @transform_11(%arg0: i32) -> (i32, i32) {
    %c0_i32 = arith.constant 0 : i32
    %c0_i32_0 = arith.constant 0 : i32
    %c0_i32_1 = arith.constant 0 : i32
    return %c0_i32, %c0_i32_0 : i32, i32
  }
  func.func @transform_12(%arg0: i32) -> (i32, i32) {
    %c0_i32 = arith.constant 0 : i32
    %c0_i32_0 = arith.constant 0 : i32
    %c0_i32_1 = arith.constant 0 : i32
    return %c0_i32, %c0_i32_0 : i32, i32
  }
  func.func @transform_13(%arg0: i32) -> (i32, i32) {
    %c0_i32 = arith.constant 0 : i32
    %c0_i32_0 = arith.constant 0 : i32
    %c0_i32_1 = arith.constant 0 : i32
    return %c0_i32, %c0_i32_0 : i32, i32
  }
}

</mosaic_0001>

<llo_original>
// kernel: tpu_custom_call.1
$region0: #{tpu_custom_call.1}
  #allocation0 [shape = 'u32[]', space=smem, size = 0x4, offset = 0x4, fixed_abs, tag = 'smem constant byte address 0x4 - core index']
  #allocation1 [shape = 'u32[72,128]{1,0:T(1,128)}', space=vmem, size = 0x9000, scoped, tag = 'internal scratch']
  #allocation2 [shape = 'f32[16,32]{1,0:T(8,128)}', space=vmem, size = 0x2000, scoped, tag = 'scratch operand']
  %s0 = inlined_call_operand.vmem [shape: s32[16,1], index: 0, kind: input, shape index: {}]
  %s1 = inlined_call_operand.vmem [shape: f32[64,32], index: 1, kind: input, shape index: {}]
  %s2 = inlined_call_operand.vmem [shape: f32[4,8,8], index: 2, kind: input, shape index: {}]
  %s3 = inlined_call_operand.vmem [shape: f32[2,1,32], index: 3, kind: input, shape index: {}]
  %s4 = inlined_call_operand.vmem [shape: f32[2,1,32], index: 4, kind: input, shape index: {}]
  %s5 = inlined_call_operand.vmem [shape: f32[2,32,96], index: 5, kind: input, shape index: {}]
  %s6 = inlined_call_operand.vmem [shape: f32[2,32,32], index: 6, kind: input, shape index: {}]
  %s7 = inlined_call_operand.vmem [shape: f32[2,1,32], index: 7, kind: input, shape index: {}]
  %s8 = inlined_call_operand.vmem [shape: f32[2,1,32], index: 8, kind: input, shape index: {}]
  %s9 = inlined_call_operand.vmem [shape: f32[2,32,128], index: 9, kind: input, shape index: {}]
  %s10 = inlined_call_operand.vmem [shape: f32[2,128,32], index: 10, kind: input, shape index: {}]
  %s11 = inlined_call_operand.vmem [shape: f32[1,32], index: 11, kind: input, shape index: {}]
  %s12 = inlined_call_operand.vmem [shape: f32[1,32], index: 12, kind: input, shape index: {}]
  %s13 = inlined_call_operand.hbm [shape: f32[16,32], index: 13, kind: output, shape index: {}]
  %s14 = sld [smem:[#allocation0]]
  $region93: #{tpu_custom_call.1} parent=0
    _
  %s16 = ssub.s32 1, %s14
  %s17 = scalar_select 0, %s16, %s14
  $region1: #{tpu_custom_call.1} parent=0
    #allocation3 [shape = 'u8[8192]{0}', space=vmem, size = 0x2000, scoped, tag = 'output window, operand 0, single buffered']
    #allocation4 [shape = 's32[2]{0}', space=sflag, size = 0x8, scoped, tag = 'scoped memory for tpu_custom_call.1']
    %18 = vsyncpa [#allocation4], 0
    loop: start=0, step=1, limit=4
    $region2: #{tpu_custom_call.1} parent=1 // loop_pre_header
      _
    $region3: #{tpu_custom_call.1} parent=1 // loop_header
      %s20 = sphi 0, %s24
      %p21 = scmp.ge.s32.totalorder %s20, 4
      %s28 = sphi 0, %s28
      %s30 = sphi 0, %s28
      %s31 = sphi 0, %s30
      %s45 = sphi 0, %s31
      %s49 = sphi 0, %s49
      %s51 = sphi 0, %s49
      %s52 = sphi 0, %s51
      %s66 = sphi 0, %s52
      %s70 = sphi 0, %s70
      %s72 = sphi 0, %s70
      %s73 = sphi 0, %s72
      %s87 = sphi 0, %s73
      %s93 = sphi 0, %s95
      %s96 = sphi 0, %s93
      %s97 = sphi 0, %s96
      %s113 = sphi 0, %s97
      %s119 = sphi 0, %s121
      %s122 = sphi 0, %s119
      %s123 = sphi 0, %s122
      %s139 = sphi 0, %s123
      %s145 = sphi 0, %s147
      %s148 = sphi 0, %s145
      %s149 = sphi 0, %s148
      %s165 = sphi 0, %s149
      %s171 = sphi 0, %s173
      %s174 = sphi 0, %s171
      %s175 = sphi 0, %s174
      %s191 = sphi 0, %s175
      %s197 = sphi 0, %s199
      %s200 = sphi 0, %s197
      %s201 = sphi 0, %s200
      %s217 = sphi 0, %s201
      %s223 = sphi 0, %s225
      %s226 = sphi 0, %s223
      %s227 = sphi 0, %s226
      %s243 = sphi 0, %s227
      %s249 = sphi 0, %s251
      %s252 = sphi 0, %s249
      %s253 = sphi 0, %s252
      %s269 = sphi 0, %s253
      %s275 = sphi 0, %s277
      %s278 = sphi 0, %s275
      %s279 = sphi 0, %s278
      %s295 = sphi 0, %s279
      %s299 = sphi 0, %s299
      %s301 = sphi 0, %s299
      %s302 = sphi 0, %s301
      %s316 = sphi 0, %s302
      %s320 = sphi 0, %s320
      %s322 = sphi 0, %s320
      %s323 = sphi 0, %s322
      %s337 = sphi 0, %s323
      %s341 = sphi 0, %s341
      %s343 = sphi 0, %s341
      %s344 = sphi 0, %s343
      %s358 = sphi 0, %s344
    $region4: #{tpu_custom_call.1} parent=1 // loop_header_branch
      %23 = sbr.rel (%p21) target = $region8
    $region5: #{tpu_custom_call.1} parent=1 // loop_body
      %s25 = ssub.s32 %s20, 1
      %s26 = ssub.s32 %s20, 2
      %s27 = sadd.s32 %s20, 1
      %s29 = sadd.s32 %s28, 1
      %p32 = scmp.eq.s32.totalorder %s20, 1
      %p33 = scmp.ne.s32.totalorder %s28, %s30
      %p34 = scmp.eq.s32.totalorder %s20, 0
      %p35 = por %p33, %p34
      %p36 = scmp.ne.s32.totalorder %s28, %s30
      %p37 = scmp.eq.s32.totalorder %s25, 1
      %p38 = por %p36, %p37
      %p39 = scmp.ne.s32.totalorder %s30, %s31
      %p40 = scmp.eq.s32.totalorder %s25, 0
      %p41 = por %p39, %p40
      %p42 = scmp.ne.s32.totalorder %s30, %s31
      %p43 = scmp.eq.s32.totalorder %s26, 1
      %p44 = por %p42, %p43
      %p46 = scmp.ne.s32.totalorder %s31, %s45
      %p47 = scmp.eq.s32.totalorder %s26, 0
      %p48 = por %p46, %p47
      %s50 = sadd.s32 %s49, 1
      %p53 = scmp.eq.s32.totalorder %s20, 1
      %p54 = scmp.ne.s32.totalorder %s49, %s51
      %p55 = scmp.eq.s32.totalorder %s20, 0
      %p56 = por %p54, %p55
      %p57 = scmp.ne.s32.totalorder %s49, %s51
      %p58 = scmp.eq.s32.totalorder %s25, 1
      %p59 = por %p57, %p58
      %p60 = scmp.ne.s32.totalorder %s51, %s52
      %p61 = scmp.eq.s32.totalorder %s25, 0
      %p62 = por %p60, %p61
      %p63 = scmp.ne.s32.totalorder %s51, %s52
      %p64 = scmp.eq.s32.totalorder %s26, 1
      %p65 = por %p63, %p64
      %p67 = scmp.ne.s32.totalorder %s52, %s66
      %p68 = scmp.eq.s32.totalorder %s26, 0
      %p69 = por %p67, %p68
      %s71 = sadd.s32 %s70, 1
      %p74 = scmp.eq.s32.totalorder %s20, 1
      %p75 = scmp.ne.s32.totalorder %s70, %s72
      %p76 = scmp.eq.s32.totalorder %s20, 0
      %p77 = por %p75, %p76
      %p78 = scmp.ne.s32.totalorder %s70, %s72
      %p79 = scmp.eq.s32.totalorder %s25, 1
      %p80 = por %p78, %p79
      %p81 = scmp.ne.s32.totalorder %s72, %s73
      %p82 = scmp.eq.s32.totalorder %s25, 0
      %p83 = por %p81, %p82
      %p84 = scmp.ne.s32.totalorder %s72, %s73
      %p85 = scmp.eq.s32.totalorder %s26, 1
      %p86 = por %p84, %p85
      %p88 = scmp.ne.s32.totalorder %s73, %s87
      %p89 = scmp.eq.s32.totalorder %s26, 0
      %p90 = por %p88, %p89
      %s91 = ssub.s32 %s20, %s27
      %p92 = scmp.eq.s32.totalorder %s91, 0
      %s94 = sadd.s32 %s93, 1
      %s95 = scalar_select %p92, %s93, %s94
      %p98 = pneg %p92
      %p99 = scmp.eq.s32.totalorder %s20, 1
      %p100 = por %p98, %p99
      %p101 = scmp.ne.s32.totalorder %s93, %s96
      %p102 = scmp.eq.s32.totalorder %s20, 0
      %p103 = por %p101, %p102
      %p104 = scmp.ne.s32.totalorder %s93, %s96
      %p105 = scmp.eq.s32.totalorder %s25, 1
      %p106 = por %p104, %p105
      %p107 = scmp.ne.s32.totalorder %s96, %s97
      %p108 = scmp.eq.s32.totalorder %s25, 0
      %p109 = por %p107, %p108
      %p110 = scmp.ne.s32.totalorder %s96, %s97
      %p111 = scmp.eq.s32.totalorder %s26, 1
      %p112 = por %p110, %p111
      %p114 = scmp.ne.s32.totalorder %s97, %s113
      %p115 = scmp.eq.s32.totalorder %s26, 0
      %p116 = por %p114, %p115
      %s117 = ssub.s32 %s20, %s27
      %p118 = scmp.eq.s32.totalorder %s117, 0
      %s120 = sadd.s32 %s119, 1
      %s121 = scalar_select %p118, %s119, %s120
      %p124 = pneg %p118
      %p125 = scmp.eq.s32.totalorder %s20, 1
      %p126 = por %p124, %p125
      %p127 = scmp.ne.s32.totalorder %s119, %s122
      %p128 = scmp.eq.s32.totalorder %s20, 0
      %p129 = por %p127, %p128
      %p130 = scmp.ne.s32.totalorder %s119, %s122
      %p131 = scmp.eq.s32.totalorder %s25, 1
      %p132 = por %p130, %p131
      %p133 = scmp.ne.s32.totalorder %s122, %s123
      %p134 = scmp.eq.s32.totalorder %s25, 0
      %p135 = por %p133, %p134
      %p136 = scmp.ne.s32.totalorder %s122, %s123
      %p137 = scmp.eq.s32.totalorder %s26, 1
      %p138 = por %p136, %p137
      %p140 = scmp.ne.s32.totalorder %s123, %s139
      %p141 = scmp.eq.s32.totalorder %s26, 0
      %p142 = por %p140, %p141
      %s143 = ssub.s32 %s20, %s27
      %p144 = scmp.eq.s32.totalorder %s143, 0
      %s146 = sadd.s32 %s145, 1
      %s147 = scalar_select %p144, %s145, %s146
      %p150 = pneg %p144
      %p151 = scmp.eq.s32.totalorder %s20, 1
      %p152 = por %p150, %p151
      %p153 = scmp.ne.s32.totalorder %s145, %s148
      %p154 = scmp.eq.s32.totalorder %s20, 0
      %p155 = por %p153, %p154
      %p156 = scmp.ne.s32.totalorder %s145, %s148
      %p157 = scmp.eq.s32.totalorder %s25, 1
      %p158 = por %p156, %p157
      %p159 = scmp.ne.s32.totalorder %s148, %s149
      %p160 = scmp.eq.s32.totalorder %s25, 0
      %p161 = por %p159, %p160
      %p162 = scmp.ne.s32.totalorder %s148, %s149
      %p163 = scmp.eq.s32.totalorder %s26, 1
      %p164 = por %p162, %p163
      %p166 = scmp.ne.s32.totalorder %s149, %s165
      %p167 = scmp.eq.s32.totalorder %s26, 0
      %p168 = por %p166, %p167
      %s169 = ssub.s32 %s20, %s27
      %p170 = scmp.eq.s32.totalorder %s169, 0
      %s172 = sadd.s32 %s171, 1
      %s173 = scalar_select %p170, %s171, %s172
      %p176 = pneg %p170
      %p177 = scmp.eq.s32.totalorder %s20, 1
      %p178 = por %p176, %p177
      %p179 = scmp.ne.s32.totalorder %s171, %s174
      %p180 = scmp.eq.s32.totalorder %s20, 0
      %p181 = por %p179, %p180
      %p182 = scmp.ne.s32.totalorder %s171, %s174
      %p183 = scmp.eq.s32.totalorder %s25, 1
      %p184 = por %p182, %p183
      %p185 = scmp.ne.s32.totalorder %s174, %s175
      %p186 = scmp.eq.s32.totalorder %s25, 0
      %p187 = por %p185, %p186
      %p188 = scmp.ne.s32.totalorder %s174, %s175
      %p189 = scmp.eq.s32.totalorder %s26, 1
      %p190 = por %p188, %p189
      %p192 = scmp.ne.s32.totalorder %s175, %s191
      %p193 = scmp.eq.s32.totalorder %s26, 0
      %p194 = por %p192, %p193
      %s195 = ssub.s32 %s20, %s27
      %p196 = scmp.eq.s32.totalorder %s195, 0
      %s198 = sadd.s32 %s197, 1
      %s199 = scalar_select %p196, %s197, %s198
      %p202 = pneg %p196
      %p203 = scmp.eq.s32.totalorder %s20, 1
      %p204 = por %p202, %p203
      %p205 = scmp.ne.s32.totalorder %s197, %s200
      %p206 = scmp.eq.s32.totalorder %s20, 0
      %p207 = por %p205, %p206
      %p208 = scmp.ne.s32.totalorder %s197, %s200
      %p209 = scmp.eq.s32.totalorder %s25, 1
      %p210 = por %p208, %p209
      %p211 = scmp.ne.s32.totalorder %s200, %s201
      %p212 = scmp.eq.s32.totalorder %s25, 0
      %p213 = por %p211, %p212
      %p214 = scmp.ne.s32.totalorder %s200, %s201
      %p215 = scmp.eq.s32.totalorder %s26, 1
      %p216 = por %p214, %p215
      %p218 = scmp.ne.s32.totalorder %s201, %s217
      %p219 = scmp.eq.s32.totalorder %s26, 0
      %p220 = por %p218, %p219
      %s221 = ssub.s32 %s20, %s27
      %p222 = scmp.eq.s32.totalorder %s221, 0
      %s224 = sadd.s32 %s223, 1
      %s225 = scalar_select %p222, %s223, %s224
      %p228 = pneg %p222
      %p229 = scmp.eq.s32.totalorder %s20, 1
      %p230 = por %p228, %p229
      %p231 = scmp.ne.s32.totalorder %s223, %s226
      %p232 = scmp.eq.s32.totalorder %s20, 0
      %p233 = por %p231, %p232
      %p234 = scmp.ne.s32.totalorder %s223, %s226
      %p235 = scmp.eq.s32.totalorder %s25, 1
      %p236 = por %p234, %p235
      %p237 = scmp.ne.s32.totalorder %s226, %s227
      %p238 = scmp.eq.s32.totalorder %s25, 0
      %p239 = por %p237, %p238
      %p240 = scmp.ne.s32.totalorder %s226, %s227
      %p241 = scmp.eq.s32.totalorder %s26, 1
      %p242 = por %p240, %p241
      %p244 = scmp.ne.s32.totalorder %s227, %s243
      %p245 = scmp.eq.s32.totalorder %s26, 0
      %p246 = por %p244, %p245
      %s247 = ssub.s32 %s20, %s27
      %p248 = scmp.eq.s32.totalorder %s247, 0
      %s250 = sadd.s32 %s249, 1
      %s251 = scalar_select %p248, %s249, %s250
      %p254 = pneg %p248
      %p255 = scmp.eq.s32.totalorder %s20, 1
      %p256 = por %p254, %p255
      %p257 = scmp.ne.s32.totalorder %s249, %s252
      %p258 = scmp.eq.s32.totalorder %s20, 0
      %p259 = por %p257, %p258
      %p260 = scmp.ne.s32.totalorder %s249, %s252
      %p261 = scmp.eq.s32.totalorder %s25, 1
      %p262 = por %p260, %p261
      %p263 = scmp.ne.s32.totalorder %s252, %s253
      %p264 = scmp.eq.s32.totalorder %s25, 0
      %p265 = por %p263, %p264
      %p266 = scmp.ne.s32.totalorder %s252, %s253
      %p267 = scmp.eq.s32.totalorder %s26, 1
      %p268 = por %p266, %p267
      %p270 = scmp.ne.s32.totalorder %s253, %s269
      %p271 = scmp.eq.s32.totalorder %s26, 0
      %p272 = por %p270, %p271
      %s273 = ssub.s32 %s20, %s27
      %p274 = scmp.eq.s32.totalorder %s273, 0
      %s276 = sadd.s32 %s275, 1
      %s277 = scalar_select %p274, %s275, %s276
      %p280 = pneg %p274
      %p281 = scmp.eq.s32.totalorder %s20, 1
      %p282 = por %p280, %p281
      %p283 = scmp.ne.s32.totalorder %s275, %s278
      %p284 = scmp.eq.s32.totalorder %s20, 0
      %p285 = por %p283, %p284
      %p286 = scmp.ne.s32.totalorder %s275, %s278
      %p287 = scmp.eq.s32.totalorder %s25, 1
      %p288 = por %p286, %p287
      %p289 = scmp.ne.s32.totalorder %s278, %s279
      %p290 = scmp.eq.s32.totalorder %s25, 0
      %p291 = por %p289, %p290
      %p292 = scmp.ne.s32.totalorder %s278, %s279
      %p293 = scmp.eq.s32.totalorder %s26, 1
      %p294 = por %p292, %p293
      %p296 = scmp.ne.s32.totalorder %s279, %s295
      %p297 = scmp.eq.s32.totalorder %s26, 0
      %p298 = por %p296, %p297
      %s300 = sadd.s32 %s299, 1
      %p303 = scmp.eq.s32.totalorder %s20, 1
      %p304 = scmp.ne.s32.totalorder %s299, %s301
      %p305 = scmp.eq.s32.totalorder %s20, 0
      %p306 = por %p304, %p305
      %p307 = scmp.ne.s32.totalorder %s299, %s301
      %p308 = scmp.eq.s32.totalorder %s25, 1
      %p309 = por %p307, %p308
      %p310 = scmp.ne.s32.totalorder %s301, %s302
      %p311 = scmp.eq.s32.totalorder %s25, 0
      %p312 = por %p310, %p311
      %p313 = scmp.ne.s32.totalorder %s301, %s302
      %p314 = scmp.eq.s32.totalorder %s26, 1
      %p315 = por %p313, %p314
      %p317 = scmp.ne.s32.totalorder %s302, %s316
      %p318 = scmp.eq.s32.totalorder %s26, 0
      %p319 = por %p317, %p318
      %s321 = sadd.s32 %s320, 1
      %p324 = scmp.eq.s32.totalorder %s20, 1
      %p325 = scmp.ne.s32.totalorder %s320, %s322
      %p326 = scmp.eq.s32.totalorder %s20, 0
      %p327 = por %p325, %p326
      %p328 = scmp.ne.s32.totalorder %s320, %s322
      %p329 = scmp.eq.s32.totalorder %s25, 1
      %p330 = por %p328, %p329
      %p331 = scmp.ne.s32.totalorder %s322, %s323
      %p332 = scmp.eq.s32.totalorder %s25, 0
      %p333 = por %p331, %p332
      %p334 = scmp.ne.s32.totalorder %s322, %s323
      %p335 = scmp.eq.s32.totalorder %s26, 1
      %p336 = por %p334, %p335
      %p338 = scmp.ne.s32.totalorder %s323, %s337
      %p339 = scmp.eq.s32.totalorder %s26, 0
      %p340 = por %p338, %p339
      %s342 = sadd.s32 %s341, 1
      %p345 = scmp.eq.s32.totalorder %s20, 1
      %p346 = scmp.ne.s32.totalorder %s341, %s343
      %p347 = scmp.eq.s32.totalorder %s20, 0
      %p348 = por %p346, %p347
      %p349 = scmp.ne.s32.totalorder %s341, %s343
      %p350 = scmp.eq.s32.totalorder %s25, 1
      %p351 = por %p349, %p350
      %p352 = scmp.ne.s32.totalorder %s343, %s344
      %p353 = scmp.eq.s32.totalorder %s25, 0
      %p354 = por %p352, %p353
      %p355 = scmp.ne.s32.totalorder %s343, %s344
      %p356 = scmp.eq.s32.totalorder %s26, 1
      %p357 = por %p355, %p356
      %p359 = scmp.ne.s32.totalorder %s344, %s358
      %p360 = scmp.eq.s32.totalorder %s26, 0
      %p361 = por %p359, %p360
      %p362 = scmp.le.s32.totalorder 1, %s20
      %p363 = scmp.lt.s32.totalorder %s20, 3
      %p364 = pnand %p362, %p363
      %p365 = pneg %p364
      // Predicated region
      $region9: #{tpu_custom_call.1} parent=5 // pred_check
        _
      $region10: #{tpu_custom_call.1} parent=5 // pred_check_branch
        %367 = sbr.rel (%p364) target = $region12
      $region11: #{tpu_custom_call.1} parent=5 // pred_region
        %s368 = ssub.s32 %s20, 1
        // Predicated region
        $region13: #{tpu_custom_call.1} parent=11 // pred_check
          %p369 = pneg %p41
        $region14: #{tpu_custom_call.1} parent=11 // pred_check_branch
          %371 = sbr.rel (%p369) target = $region16
        $region15: #{tpu_custom_call.1} parent=11 // pred_region
          _
        $region16: #{tpu_custom_call.1} parent=11 // pred_fallthru
          _
        // Predicated region
        $region17: #{tpu_custom_call.1} parent=11 // pred_check
          %p372 = pneg %p62
        $region18: #{tpu_custom_call.1} parent=11 // pred_check_branch
          %374 = sbr.rel (%p372) target = $region20
        $region19: #{tpu_custom_call.1} parent=11 // pred_region
          _
        $region20: #{tpu_custom_call.1} parent=11 // pred_fallthru
          _
        // Predicated region
        $region21: #{tpu_custom_call.1} parent=11 // pred_check
          %p375 = pneg %p83
        $region22: #{tpu_custom_call.1} parent=11 // pred_check_branch
          %377 = sbr.rel (%p375) target = $region24
        $region23: #{tpu_custom_call.1} parent=11 // pred_region
          _
        $region24: #{tpu_custom_call.1} parent=11 // pred_fallthru
          _
        // Predicated region
        $region25: #{tpu_custom_call.1} parent=11 // pred_check
          %p378 = pneg %p312
        $region26: #{tpu_custom_call.1} parent=11 // pred_check_branch
          %380 = sbr.rel (%p378) target = $region28
        $region27: #{tpu_custom_call.1} parent=11 // pred_region
          _
        $region28: #{tpu_custom_call.1} parent=11 // pred_fallthru
          _
        // Predicated region
        $region29: #{tpu_custom_call.1} parent=11 // pred_check
          %p381 = pneg %p333
        $region30: #{tpu_custom_call.1} parent=11 // pred_check_branch
          %383 = sbr.rel (%p381) target = $region32
        $region31: #{tpu_custom_call.1} parent=11 // pred_region
          _
        $region32: #{tpu_custom_call.1} parent=11 // pred_fallthru
          _
      $region12: #{tpu_custom_call.1} parent=5 // pred_fallthru
        _
      %p384 = scmp.lt.s32.totalorder %s20, 2
      // Predicated region
      $region33: #{tpu_custom_call.1} parent=5 // pred_check
        %p385 = pneg %p384
      $region34: #{tpu_custom_call.1} parent=5 // pred_check_branch
        %387 = sbr.rel (%p385) target = $region36
      $region35: #{tpu_custom_call.1} parent=5 // pred_region
        // Predicated region
        $region37: #{tpu_custom_call.1} parent=35 // pred_check
          %p388 = pneg %p103
        $region38: #{tpu_custom_call.1} parent=35 // pred_check_branch
          %390 = sbr.rel (%p388) target = $region40
        $region39: #{tpu_custom_call.1} parent=35 // pred_region
          %p391 = scmp.lt.s32.totalorder %s20, 1
          %s392 = scalar_select %p391, %s20, 1
          %s393 = scalar_lea.vmem %s3, %s392
        $region40: #{tpu_custom_call.1} parent=35 // pred_fallthru
          _
        // Predicated region
        $region41: #{tpu_custom_call.1} parent=35 // pred_check
          %p394 = pneg %p129
        $region42: #{tpu_custom_call.1} parent=35 // pred_check_branch
          %396 = sbr.rel (%p394) target = $region44
        $region43: #{tpu_custom_call.1} parent=35 // pred_region
          %p397 = scmp.lt.s32.totalorder %s20, 1
          %s398 = scalar_select %p397, %s20, 1
          %s399 = scalar_lea.vmem %s4, %s398
        $region44: #{tpu_custom_call.1} parent=35 // pred_fallthru
          _
        // Predicated region
        $region45: #{tpu_custom_call.1} parent=35 // pred_check
          %p400 = pneg %p155
        $region46: #{tpu_custom_call.1} parent=35 // pred_check_branch
          %402 = sbr.rel (%p400) target = $region48
        $region47: #{tpu_custom_call.1} parent=35 // pred_region
          %p403 = scmp.lt.s32.totalorder %s20, 1
          %s404 = scalar_select %p403, %s20, 1
          %s405 = smul.addr %s404, 4
          %s406 = smul.addr %s405, 8
          %s407 = scalar_lea.vmem %s5, %s406
        $region48: #{tpu_custom_call.1} parent=35 // pred_fallthru
          _
        // Predicated region
        $region49: #{tpu_custom_call.1} parent=35 // pred_check
          %p408 = pneg %p181
        $region50: #{tpu_custom_call.1} parent=35 // pred_check_branch
          %410 = sbr.rel (%p408) target = $region52
        $region51: #{tpu_custom_call.1} parent=35 // pred_region
          %p411 = scmp.lt.s32.totalorder %s20, 1
          %s412 = scalar_select %p411, %s20, 1
          %s413 = smul.addr %s412, 4
          %s414 = smul.addr %s413, 8
          %s415 = scalar_lea.vmem %s6, %s414
        $region52: #{tpu_custom_call.1} parent=35 // pred_fallthru
          _
        // Predicated region
        $region53: #{tpu_custom_call.1} parent=35 // pred_check
          %p416 = pneg %p207
        $region54: #{tpu_custom_call.1} parent=35 // pred_check_branch
          %418 = sbr.rel (%p416) target = $region56
        $region55: #{tpu_custom_call.1} parent=35 // pred_region
          %p419 = scmp.lt.s32.totalorder %s20, 1
          %s420 = scalar_select %p419, %s20, 1
          %s421 = scalar_lea.vmem %s7, %s420
        $region56: #{tpu_custom_call.1} parent=35 // pred_fallthru
          _
        // Predicated region
        $region57: #{tpu_custom_call.1} parent=35 // pred_check
          %p422 = pneg %p233
        $region58: #{tpu_custom_call.1} parent=35 // pred_check_branch
          %424 = sbr.rel (%p422) target = $region60
        $region59: #{tpu_custom_call.1} parent=35 // pred_region
          %p425 = scmp.lt.s32.totalorder %s20, 1
          %s426 = scalar_select %p425, %s20, 1
          %s427 = scalar_lea.vmem %s8, %s426
        $region60: #{tpu_custom_call.1} parent=35 // pred_fallthru
          _
        // Predicated region
        $region61: #{tpu_custom_call.1} parent=35 // pred_check
          %p428 = pneg %p259
        $region62: #{tpu_custom_call.1} parent=35 // pred_check_branch
          %430 = sbr.rel (%p428) target = $region64
        $region63: #{tpu_custom_call.1} parent=35 // pred_region
          %p431 = scmp.lt.s32.totalorder %s20, 1
          %s432 = scalar_select %p431, %s20, 1
          %s433 = smul.addr %s432, 4
          %s434 = smul.addr %s433, 8
          %s435 = scalar_lea.vmem %s9, %s434
        $region64: #{tpu_custom_call.1} parent=35 // pred_fallthru
          _
        // Predicated region
        $region65: #{tpu_custom_call.1} parent=35 // pred_check
          %p436 = pneg %p285
        $region66: #{tpu_custom_call.1} parent=35 // pred_check_branch
          %438 = sbr.rel (%p436) target = $region68
        $region67: #{tpu_custom_call.1} parent=35 // pred_region
          %p439 = scmp.lt.s32.totalorder %s20, 1
          %s440 = scalar_select %p439, %s20, 1
          %s441 = smul.addr %s440, 16
          %s442 = smul.addr %s441, 8
          %s443 = scalar_lea.vmem %s10, %s442
        $region68: #{tpu_custom_call.1} parent=35 // pred_fallthru
          _
      $region36: #{tpu_custom_call.1} parent=5 // pred_fallthru
        _
      %p444 = scmp.le.s32.totalorder 1, %s20
      %p445 = scmp.lt.s32.totalorder %s20, 3
      %p446 = pnand %p444, %p445
      %p447 = pneg %p446
      // Predicated region
      $region69: #{tpu_custom_call.1} parent=5 // pred_check
        _
      $region70: #{tpu_custom_call.1} parent=5 // pred_check_branch
        %449 = sbr.rel (%p446) target = $region72
      $region71: #{tpu_custom_call.1} parent=5 // pred_region
        %s450 = ssub.s32 %s20, 1
        %p451 = pneg %p41
        %p452 = pneg %p38
        %p453 = pneg %p62
        %p454 = pneg %p59
        %p455 = pneg %p83
        %p456 = pneg %p80
        %p457 = scmp.lt.s32.totalorder %s25, 1
        %s458 = scalar_select %p457, %s25, 1
        %s459 = scalar_lea.vmem %s3, %s458
        %p460 = pneg %p109
        %p461 = pneg %p106
        %p462 = scmp.lt.s32.totalorder %s25, 1
        %s463 = scalar_select %p462, %s25, 1
        %s464 = scalar_lea.vmem %s4, %s463
        %p465 = pneg %p135
        %p466 = pneg %p132
        %p467 = scmp.lt.s32.totalorder %s25, 1
        %s468 = scalar_select %p467, %s25, 1
        %s469 = smul.addr %s468, 4
        %s470 = smul.addr %s469, 8
        %s471 = scalar_lea.vmem %s5, %s470
        %p472 = pneg %p161
        %p473 = pneg %p158
        %p474 = scmp.lt.s32.totalorder %s25, 1
        %s475 = scalar_select %p474, %s25, 1
        %s476 = smul.addr %s475, 4
        %s477 = smul.addr %s476, 8
        %s478 = scalar_lea.vmem %s6, %s477
        %p479 = pneg %p187
        %p480 = pneg %p184
        %p481 = scmp.lt.s32.totalorder %s25, 1
        %s482 = scalar_select %p481, %s25, 1
        %s483 = scalar_lea.vmem %s7, %s482
        %p484 = pneg %p213
        %p485 = pneg %p210
        %p486 = scmp.lt.s32.totalorder %s25, 1
        %s487 = scalar_select %p486, %s25, 1
        %s488 = scalar_lea.vmem %s8, %s487
        %p489 = pneg %p239
        %p490 = pneg %p236
        %p491 = scmp.lt.s32.totalorder %s25, 1
        %s492 = scalar_select %p491, %s25, 1
        %s493 = smul.addr %s492, 4
        %s494 = smul.addr %s493, 8
        %s495 = scalar_lea.vmem %s9, %s494
        %p496 = pneg %p265
        %p497 = pneg %p262
        %p498 = scmp.lt.s32.totalorder %s25, 1
        %s499 = scalar_select %p498, %s25, 1
        %s500 = smul.addr %s499, 16
        %s501 = smul.addr %s500, 8
        %s502 = scalar_lea.vmem %s10, %s501
        %p503 = pneg %p291
        %p504 = pneg %p288
        %p505 = pneg %p312
        %p506 = pneg %p309
        %p507 = pneg %p333
        %p508 = pneg %p330
        %p509 = pneg %p354
        %p510 = pneg %p351
        %p511 = scmp.lt.s32.totalorder %s25, 1
        %s512 = scalar_select %p511, %s25, 1
        %s513 = scalar_lea.vmem %s3, %s512
        %p514 = scmp.lt.s32.totalorder %s25, 1
        %s515 = scalar_select %p514, %s25, 1
        %s516 = scalar_lea.vmem %s4, %s515
        %p517 = scmp.lt.s32.totalorder %s25, 1
        %s518 = scalar_select %p517, %s25, 1
        %s519 = smul.addr %s518, 4
        %s520 = smul.addr %s519, 8
        %s521 = scalar_lea.vmem %s5, %s520
        %p522 = scmp.lt.s32.totalorder %s25, 1
        %s523 = scalar_select %p522, %s25, 1
        %s524 = smul.addr %s523, 4
        %s525 = smul.addr %s524, 8
        %s526 = scalar_lea.vmem %s6, %s525
        %p527 = scmp.lt.s32.totalorder %s25, 1
        %s528 = scalar_select %p527, %s25, 1
        %s529 = scalar_lea.vmem %s7, %s528
        %p530 = scmp.lt.s32.totalorder %s25, 1
        %s531 = scalar_select %p530, %s25, 1
        %s532 = scalar_lea.vmem %s8, %s531
        %p533 = scmp.lt.s32.totalorder %s25, 1
        %s534 = scalar_select %p533, %s25, 1
        %s535 = smul.addr %s534, 4
        %s536 = smul.addr %s535, 8
        %s537 = scalar_lea.vmem %s9, %s536
        %p538 = scmp.lt.s32.totalorder %s25, 1
        %s539 = scalar_select %p538, %s25, 1
        %s540 = smul.addr %s539, 16
        %s541 = smul.addr %s540, 8
        %s542 = scalar_lea.vmem %s10, %s541
        %p543 = scmp.eq.s32.totalorder %s25, 0
        // Predicated region
        $region73: #{tpu_custom_call.1} parent=71 // pred_check
          %p544 = pneg %p543
        $region74: #{tpu_custom_call.1} parent=71 // pred_check_branch
          %546 = sbr.rel (%p544) target = $region76
        $region75: #{tpu_custom_call.1} parent=71 // pred_region
          %v547 = vlaneseq
          %v548 = vand.u32 %v547, 127
          %v549 = vld [vmem:[%s0] sm:$0xff]
          %v550 = vld [vmem:[%s0 + $0x8] sm:$0xff]
          %551 = vset.pattern.permute.xlu0 0
          %552 = vperm.xlu0 %551, %v549
          %v553 = vpop.permute.xlu0 %552
          %554 = vset.pattern.permute.xlu0 0
          %555 = vperm.xlu0 %554, %v550
          %v556 = vpop.permute.xlu0 %555
          %vm557 = vcmp.eq.s32.totalorder %v553, %v548
          %vm558 = vcmp.eq.s32.totalorder %v556, %v548
          %v559 = vsel %vm557, 1, 0
          %v560 = vsel %vm558, 1, 0
          %v561 = vcvt.s32.f32 %v559
          %v562 = vcvt.s32.f32 %v560
          %v563 = vld [vmem:[%s1] sm:$0xff]
          %v564 = vld [vmem:[%s1 + $0x8] sm:$0xff]
          %v565 = vld [vmem:[%s1 + $0x10] sm:$0xff]
          %v566 = vld [vmem:[%s1 + $0x18] sm:$0xff]
          %v567 = vld [vmem:[%s1 + $0x20] sm:$0xff]
          %v568 = vld [vmem:[%s1 + $0x28] sm:$0xff]
          %v569 = vld [vmem:[%s1 + $0x30] sm:$0xff]
          %v570 = vld [vmem:[%s1 + $0x38] sm:$0xff]
          %vm571 = vcmask 523264
          %v573 = vsel %vm571, %v561, 0
          %v576 = vsel %vm571, %v562, 0
          %578 = vmatpush.msra.mxu0 0.0
          %579 = vmatpush.msra.mxu0 0.0
          %580 = vmatpush.msra.mxu0 0.0
          %581 = vmatpush.msra.mxu0 0.0
          %582 = vmatpush.msra.mxu0 0.0
          %583 = vmatpush.msra.mxu0 0.0
          %584 = vmatpush.msra.mxu0 0.0
          %585 = vmatpush.msra.mxu0 0.0
          %586 = vmatpush.msra.mxu0 %v570
          %587 = vmatpush.msra.mxu0 %v569
          %588 = vmatpush.msra.mxu0 %v568
          %589 = vmatpush.msra.mxu0 %v567
          %590 = vmatpush.msra.mxu0 %v566
          %591 = vmatpush.msra.mxu0 %v565
          %592 = vmatpush.msra.mxu0 %v564
          %593 = vmatpush.msra.mxu0 %v563
          %594 = vmatmul.f32.gmra.mxu0 %v573
          %v595 = vpop.f32.mrf.mxu0
          %v596 = vadd.f32 0.0, %v595
          %597 = vmatmul.f32.gmra.mxu0 %v576
          %v598 = vpop.f32.mrf.mxu0
          %v599 = vadd.f32 0.0, %v598
          %600 = vdwg.mxu0
          %vm601 = vcmask 261120
          %602 = vst.msk [vmem:[#allocation2] sm:$0xff] %vm601, %v596
          %603 = vst.msk [vmem:[#allocation2 + $0x8] sm:$0xff] %vm601, %v599
        $region76: #{tpu_custom_call.1} parent=71 // pred_fallthru
          _
        %v604 = vld [vmem:[#allocation2] sm:$0xff]
        %v605 = vld [vmem:[#allocation2 + $0x8] sm:$0xff]
        %vm606 = vcmask 261120
        %v607 = vsel %vm606, %v604, 0.0
        %608 = vadd.xlane.f32.xlu0 %v607
        %v609 = vpop.xlane.xlu0 %608
        %v610 = vsel %vm606, %v605, 0.0
        %611 = vadd.xlane.f32.xlu0 %v610
        %v612 = vpop.xlane.xlu0 %611
        %v613 = vrcp.pop 32.0
        %v614 = vmul.f32 32.0, %v613
        %v615 = vsub.f32 1.0, %v614
        %v616 = vmul.f32 %v613, %v615
        %v617 = vadd.f32 %v613, %v616
        %vm618 = vweird.f32 %v613
        %v619 = vsel %vm618, %v613, %v617
        %v620 = vmul.f32 %v609, %v619
        %v621 = vmul.f32 %v612, %v619
        %v622 = vsub.f32 %v604, %v620
        %v623 = vsub.f32 %v605, %v621
        %v624 = vmul.f32 %v622, %v622
        %v625 = vmul.f32 %v623, %v623
        %v626 = vsel %vm606, %v624, 0.0
        %627 = vadd.xlane.f32.xlu0 %v626
        %v628 = vpop.xlane.xlu0 %627
        %v629 = vsel %vm606, %v625, 0.0
        %630 = vadd.xlane.f32.xlu0 %v629
        %v631 = vpop.xlane.xlu0 %630
        %v632 = vmul.f32 %v628, %v619
        %v633 = vmul.f32 %v631, %v619
        %v634 = vadd.f32 %v632, 1e-05
        %v635 = vadd.f32 %v633, 1e-05
        %v636 = vrsqrt.pop %v634
        %v637 = vmul.f32 %v636, %v634
        %v638 = vmul.f32 %v637, %v636
        %v639 = vmul.f32 0.5, %v638
        %v640 = vsub.f32 1.5, %v639
        %v641 = vmul.f32 %v636, %v640
        %vm642 = vweird.f32 %v634
        %vm643 = vweird.f32 %v636
        %vm644 = vmor %vm642, %vm643
        %v645 = vsel %vm644, %v636, %v641
        %v646 = vrsqrt.pop %v635
        %v647 = vmul.f32 %v646, %v635
        %v648 = vmul.f32 %v647, %v646
        %v649 = vmul.f32 0.5, %v648
        %v650 = vsub.f32 1.5, %v649
        %v651 = vmul.f32 %v646, %v650
        %vm652 = vweird.f32 %v635
        %vm653 = vweird.f32 %v646
        %vm654 = vmor %vm652, %vm653
        %v655 = vsel %vm654, %v646, %v651
        %v656 = vmul.f32 %v622, %v645
        %v657 = vmul.f32 %v623, %v655
        %v658 = vld [vmem:[%s513] sm:$0x1]
        %v660 = vperm.slane %v658, 0
        %v662 = vmul.f32 %v656, %v660
        %v663 = vmul.f32 %v657, %v660
        %v664 = vld [vmem:[%s516] sm:$0x1]
        %v666 = vperm.slane %v664, 0
        %v668 = vadd.f32 %v662, %v666
        %v669 = vadd.f32 %v663, %v666
        %v670 = vld [vmem:[%s521] sm:$0xff]
        %v671 = vld [vmem:[%s521 + $0x8] sm:$0xff]
        %v672 = vld [vmem:[%s521 + $0x10] sm:$0xff]
        %v673 = vld [vmem:[%s521 + $0x18] sm:$0xff]
        %v675 = vsel %vm606, %v668, 0
        %v678 = vsel %vm606, %v669, 0
        %680 = vmatpush.msra.mxu0 0.0
        %681 = vmatpush.msra.mxu0 0.0
        %682 = vmatpush.msra.mxu0 0.0
        %683 = vmatpush.msra.mxu0 0.0
        %684 = vmatpush.msra.mxu0 0.0
        %685 = vmatpush.msra.mxu0 0.0
        %686 = vmatpush.msra.mxu0 0.0
        %687 = vmatpush.msra.mxu0 0.0
        %688 = vmatpush.msra.mxu0 0.0
        %689 = vmatpush.msra.mxu0 0.0
        %690 = vmatpush.msra.mxu0 0.0
        %691 = vmatpush.msra.mxu0 0.0
        %692 = vmatpush.msra.mxu0 %v673
        %693 = vmatpush.msra.mxu0 %v672
        %694 = vmatpush.msra.mxu0 %v671
        %695 = vmatpush.msra.mxu0 %v670
        %696 = vmatmul.f32.gmra.mxu0 %v675
        %v697 = vpop.f32.mrf.mxu0
        %v698 = vadd.f32 0.0, %v697
        %699 = vmatmul.f32.gmra.mxu0 %v678
        %v700 = vpop.f32.mrf.mxu0
        %v701 = vadd.f32 0.0, %v700
        %702 = vdwg.mxu0
        %v703 = vld [vmem:[%s526] sm:$0xff]
        %v704 = vld [vmem:[%s526 + $0x8] sm:$0xff]
        %v705 = vld [vmem:[%s526 + $0x10] sm:$0xff]
        %v706 = vld [vmem:[%s526 + $0x18] sm:$0xff]
        %708 = vrot.lane.b32.xlu0 %v698, 96
        %v709 = vpop.permute.xlu0 %708
        %vm710 = vcmask 64512
        %v711 = vsel %vm710, %v698, 0
        %v713 = vsel %vm710, %v709, 0
        %715 = vmatpush.xpose.msra.mxu0 0.0
        %716 = vmatpush.xpose.msra.mxu0 0.0
        %717 = vmatpush.xpose.msra.mxu0 0.0
        %718 = vmatpush.xpose.msra.mxu0 0.0
        %719 = vmatpush.xpose.msra.mxu0 0.0
        %720 = vmatpush.xpose.msra.mxu0 0.0
        %721 = vmatpush.xpose.msra.mxu0 0.0
        %722 = vmatpush.xpose.msra.mxu0 0.0
        %723 = vmatpush.xpose.msra.mxu0 0.0
        %724 = vmatpush.xpose.msra.mxu0 0.0
        %725 = vmatpush.xpose.msra.mxu0 0.0
        %726 = vmatpush.xpose.msra.mxu0 0.0
        %727 = vmatpush.xpose.msra.mxu0 0.0
        %728 = vmatpush.xpose.msra.mxu0 0.0
        %729 = vmatpush.xpose.msra.mxu0 0.0
        %730 = vmatpush.xpose.msra.mxu0 %v713
        %731 = vmatmul.f32.gmra.mxu0 %v711
        %v732 = vpop.f32.mrf.mxu0
        %v733 = vadd.f32 0.0, %v732
        %734 = vdwg.mxu0
        %v735 = vmul.f32 %v733, 0.35355338
        %v736 = vld [vmem:[%s2] sm:$0xff]
        %v737 = vadd.f32 %v735, %v736
        %v738 = vsel %vm710, %v737, -inf
        %739 = vmax.xlane.f32.xlu0 %v738
        %v740 = vpop.xlane.xlu0 %739
        %v741 = vsub.f32 %v737, %v740
        %v742 = vmul.f32 %v741, 1.442695
        %v743 = vpow.pop %v742
        %v744 = vsel %vm710, %v743, 0.0
        %745 = vadd.xlane.f32.xlu0 %v744
        %v746 = vpop.xlane.xlu0 %745
        %747 = vrot.lane.b32.xlu0 %v698, 64
        %v748 = vpop.permute.xlu0 %747
        %v751 = vsel %vm710, %v743, 0
        %753 = vmatpush.msra.mxu0 0.0
        %754 = vmatpush.msra.mxu0 0.0
        %755 = vmatpush.msra.mxu0 0.0
        %756 = vmatpush.msra.mxu0 0.0
        %757 = vmatpush.msra.mxu0 0.0
        %758 = vmatpush.msra.mxu0 0.0
        %759 = vmatpush.msra.mxu0 0.0
        %760 = vmatpush.msra.mxu0 0.0
        %761 = vmatpush.msra.mxu0 0.0
        %762 = vmatpush.msra.mxu0 0.0
        %763 = vmatpush.msra.mxu0 0.0
        %764 = vmatpush.msra.mxu0 0.0
        %765 = vmatpush.msra.mxu0 0.0
        %766 = vmatpush.msra.mxu0 0.0
        %767 = vmatpush.msra.mxu0 0.0
        %768 = vmatpush.msra.mxu0 %v748
        %769 = vmatmul.f32.gmra.mxu0 %v751
        %v770 = vpop.f32.mrf.mxu0
        %v771 = vadd.f32 0.0, %v770
        %772 = vdwg.mxu0
        %v773 = vrcp.pop %v746
        %v774 = vmul.f32 %v771, %v773
        %775 = vrot.lane.b32.xlu0 %v698, 120
        %v776 = vpop.permute.xlu0 %775
        %777 = vrot.lane.b32.xlu0 %v698, 88
        %v778 = vpop.permute.xlu0 %777
        %v779 = vsel %vm710, %v776, 0
        %v781 = vsel %vm710, %v778, 0
        %783 = vmatpush.xpose.msra.mxu0 0.0
        %784 = vmatpush.xpose.msra.mxu0 0.0
        %785 = vmatpush.xpose.msra.mxu0 0.0
        %786 = vmatpush.xpose.msra.mxu0 0.0
        %787 = vmatpush.xpose.msra.mxu0 0.0
        %788 = vmatpush.xpose.msra.mxu0 0.0
        %789 = vmatpush.xpose.msra.mxu0 0.0
        %790 = vmatpush.xpose.msra.mxu0 0.0
        %791 = vmatpush.xpose.msra.mxu0 0.0
        %792 = vmatpush.xpose.msra.mxu0 0.0
        %793 = vmatpush.xpose.msra.mxu0 0.0
        %794 = vmatpush.xpose.msra.mxu0 0.0
        %795 = vmatpush.xpose.msra.mxu0 0.0
        %796 = vmatpush.xpose.msra.mxu0 0.0
        %797 = vmatpush.xpose.msra.mxu0 0.0
        %798 = vmatpush.xpose.msra.mxu0 %v781
        %799 = vmatmul.f32.gmra.mxu0 %v779
        %v800 = vpop.f32.mrf.mxu0
        %v801 = vadd.f32 0.0, %v800
        %802 = vdwg.mxu0
        %v803 = vmul.f32 %v801, 0.35355338
        %s804 = scalar_lea.vmem %s2, 8
        %v805 = vld [vmem:[%s804] sm:$0xff]
        %v806 = vadd.f32 %v803, %v805
        %v807 = vsel %vm710, %v806, -inf
        %808 = vmax.xlane.f32.xlu0 %v807
        %v809 = vpop.xlane.xlu0 %808
        %v810 = vsub.f32 %v806, %v809
        %v811 = vmul.f32 %v810, 1.442695
        %v812 = vpow.pop %v811
        %v813 = vsel %vm710, %v812, 0.0
        %814 = vadd.xlane.f32.xlu0 %v813
        %v815 = vpop.xlane.xlu0 %814
        %816 = vrot.lane.b32.xlu0 %v698, 56
        %v817 = vpop.permute.xlu0 %816
        %v820 = vsel %vm710, %v812, 0
        %822 = vmatpush.msra.mxu0 0.0
        %823 = vmatpush.msra.mxu0 0.0
        %824 = vmatpush.msra.mxu0 0.0
        %825 = vmatpush.msra.mxu0 0.0
        %826 = vmatpush.msra.mxu0 0.0
        %827 = vmatpush.msra.mxu0 0.0
        %828 = vmatpush.msra.mxu0 0.0
        %829 = vmatpush.msra.mxu0 0.0
        %830 = vmatpush.msra.mxu0 0.0
        %831 = vmatpush.msra.mxu0 0.0
        %832 = vmatpush.msra.mxu0 0.0
        %833 = vmatpush.msra.mxu0 0.0
        %834 = vmatpush.msra.mxu0 0.0
        %835 = vmatpush.msra.mxu0 0.0
        %836 = vmatpush.msra.mxu0 0.0
        %837 = vmatpush.msra.mxu0 %v817
        %838 = vmatmul.f32.gmra.mxu0 %v820
        %v839 = vpop.f32.mrf.mxu0
        %v840 = vadd.f32 0.0, %v839
        %841 = vdwg.mxu0
        %v842 = vrcp.pop %v815
        %v843 = vmul.f32 %v840, %v842
        %v845 = vsel %vm710, %v843, 0
        %847 = vmatpush.msra.mxu0 0.0
        %848 = vmatpush.msra.mxu0 0.0
        %849 = vmatpush.msra.mxu0 0.0
        %850 = vmatpush.msra.mxu0 0.0
        %851 = vmatpush.msra.mxu0 0.0
        %852 = vmatpush.msra.mxu0 0.0
        %853 = vmatpush.msra.mxu0 0.0
        %854 = vmatpush.msra.mxu0 0.0
        %855 = vmatpush.msra.mxu0 0.0
        %856 = vmatpush.msra.mxu0 0.0
        %857 = vmatpush.msra.mxu0 0.0
        %858 = vmatpush.msra.mxu0 0.0
        %859 = vmatpush.msra.mxu0 0.0
        %860 = vmatpush.msra.mxu0 0.0
        %861 = vmatpush.msra.mxu0 0.0
        %862 = vmatpush.msra.mxu0 %v704
        %863 = vmatmul.f32.gmra.mxu0 %v845
        %v864 = vpop.f32.mrf.mxu0
        %v865 = vadd.f32 0.0, %v864
        %866 = vdwg.mxu0
        %v868 = vsel %vm710, %v774, 0
        %870 = vmatpush.msra.mxu0 0.0
        %871 = vmatpush.msra.mxu0 0.0
        %872 = vmatpush.msra.mxu0 0.0
        %873 = vmatpush.msra.mxu0 0.0
        %874 = vmatpush.msra.mxu0 0.0
        %875 = vmatpush.msra.mxu0 0.0
        %876 = vmatpush.msra.mxu0 0.0
        %877 = vmatpush.msra.mxu0 0.0
        %878 = vmatpush.msra.mxu0 0.0
        %879 = vmatpush.msra.mxu0 0.0
        %880 = vmatpush.msra.mxu0 0.0
        %881 = vmatpush.msra.mxu0 0.0
        %882 = vmatpush.msra.mxu0 0.0
        %883 = vmatpush.msra.mxu0 0.0
        %884 = vmatpush.msra.mxu0 0.0
        %885 = vmatpush.msra.mxu0 %v703
        %886 = vmatmul.f32.gmra.mxu0 %v868
        %v887 = vpop.f32.mrf.mxu0
        %v888 = vadd.f32 %v865, %v887
        %889 = vdwg.mxu0
        %890 = vrot.lane.b32.xlu0 %v698, 112
        %v891 = vpop.permute.xlu0 %890
        %892 = vrot.lane.b32.xlu0 %v698, 80
        %v893 = vpop.permute.xlu0 %892
        %v894 = vsel %vm710, %v891, 0
        %v896 = vsel %vm710, %v893, 0
        %898 = vmatpush.xpose.msra.mxu0 0.0
        %899 = vmatpush.xpose.msra.mxu0 0.0
        %900 = vmatpush.xpose.msra.mxu0 0.0
        %901 = vmatpush.xpose.msra.mxu0 0.0
        %902 = vmatpush.xpose.msra.mxu0 0.0
        %903 = vmatpush.xpose.msra.mxu0 0.0
        %904 = vmatpush.xpose.msra.mxu0 0.0
        %905 = vmatpush.xpose.msra.mxu0 0.0
        %906 = vmatpush.xpose.msra.mxu0 0.0
        %907 = vmatpush.xpose.msra.mxu0 0.0
        %908 = vmatpush.xpose.msra.mxu0 0.0
        %909 = vmatpush.xpose.msra.mxu0 0.0
        %910 = vmatpush.xpose.msra.mxu0 0.0
        %911 = vmatpush.xpose.msra.mxu0 0.0
        %912 = vmatpush.xpose.msra.mxu0 0.0
        %913 = vmatpush.xpose.msra.mxu0 %v896
        %914 = vmatmul.f32.gmra.mxu0 %v894
        %v915 = vpop.f32.mrf.mxu0
        %v916 = vadd.f32 0.0, %v915
        %917 = vdwg.mxu0
        %v918 = vmul.f32 %v916, 0.35355338
        %s919 = scalar_lea.vmem %s2, 16
        %v920 = vld [vmem:[%s919] sm:$0xff]
        %v921 = vadd.f32 %v918, %v920
        %v922 = vsel %vm710, %v921, -inf
        %923 = vmax.xlane.f32.xlu0 %v922
        %v924 = vpop.xlane.xlu0 %923
        %v925 = vsub.f32 %v921, %v924
        %v926 = vmul.f32 %v925, 1.442695
        %v927 = vpow.pop %v926
        %v928 = vsel %vm710, %v927, 0.0
        %929 = vadd.xlane.f32.xlu0 %v928
        %v930 = vpop.xlane.xlu0 %929
        %931 = vrot.lane.b32.xlu0 %v698, 48
        %v932 = vpop.permute.xlu0 %931
        %v935 = vsel %vm710, %v927, 0
        %937 = vmatpush.msra.mxu0 0.0
        %938 = vmatpush.msra.mxu0 0.0
        %939 = vmatpush.msra.mxu0 0.0
        %940 = vmatpush.msra.mxu0 0.0
        %941 = vmatpush.msra.mxu0 0.0
        %942 = vmatpush.msra.mxu0 0.0
        %943 = vmatpush.msra.mxu0 0.0
        %944 = vmatpush.msra.mxu0 0.0
        %945 = vmatpush.msra.mxu0 0.0
        %946 = vmatpush.msra.mxu0 0.0
        %947 = vmatpush.msra.mxu0 0.0
        %948 = vmatpush.msra.mxu0 0.0
        %949 = vmatpush.msra.mxu0 0.0
        %950 = vmatpush.msra.mxu0 0.0
        %951 = vmatpush.msra.mxu0 0.0
        %952 = vmatpush.msra.mxu0 %v932
        %953 = vmatmul.f32.gmra.mxu0 %v935
        %v954 = vpop.f32.mrf.mxu0
        %v955 = vadd.f32 0.0, %v954
        %956 = vdwg.mxu0
        %v957 = vrcp.pop %v930
        %v958 = vmul.f32 %v955, %v957
        %v960 = vsel %vm710, %v958, 0
        %962 = vmatpush.msra.mxu0 0.0
        %963 = vmatpush.msra.mxu0 0.0
        %964 = vmatpush.msra.mxu0 0.0
        %965 = vmatpush.msra.mxu0 0.0
        %966 = vmatpush.msra.mxu0 0.0
        %967 = vmatpush.msra.mxu0 0.0
        %968 = vmatpush.msra.mxu0 0.0
        %969 = vmatpush.msra.mxu0 0.0
        %970 = vmatpush.msra.mxu0 0.0
        %971 = vmatpush.msra.mxu0 0.0
        %972 = vmatpush.msra.mxu0 0.0
        %973 = vmatpush.msra.mxu0 0.0
        %974 = vmatpush.msra.mxu0 0.0
        %975 = vmatpush.msra.mxu0 0.0
        %976 = vmatpush.msra.mxu0 0.0
        %977 = vmatpush.msra.mxu0 %v705
        %978 = vmatmul.f32.gmra.mxu0 %v960
        %v979 = vpop.f32.mrf.mxu0
        %v980 = vadd.f32 0.0, %v979
        %981 = vdwg.mxu0
        %v982 = vadd.f32 %v888, %v980
        %983 = vrot.lane.b32.xlu0 %v698, 104
        %v984 = vpop.permute.xlu0 %983
        %985 = vrot.lane.b32.xlu0 %v698, 72
        %v986 = vpop.permute.xlu0 %985
        %v987 = vsel %vm710, %v984, 0
        %v989 = vsel %vm710, %v986, 0
        %991 = vmatpush.xpose.msra.mxu0 0.0
        %992 = vmatpush.xpose.msra.mxu0 0.0
        %993 = vmatpush.xpose.msra.mxu0 0.0
        %994 = vmatpush.xpose.msra.mxu0 0.0
        %995 = vmatpush.xpose.msra.mxu0 0.0
        %996 = vmatpush.xpose.msra.mxu0 0.0
        %997 = vmatpush.xpose.msra.mxu0 0.0
        %998 = vmatpush.xpose.msra.mxu0 0.0
        %999 = vmatpush.xpose.msra.mxu0 0.0
        %1000 = vmatpush.xpose.msra.mxu0 0.0
        %1001 = vmatpush.xpose.msra.mxu0 0.0
        %1002 = vmatpush.xpose.msra.mxu0 0.0
        %1003 = vmatpush.xpose.msra.mxu0 0.0
        %1004 = vmatpush.xpose.msra.mxu0 0.0
        %1005 = vmatpush.xpose.msra.mxu0 0.0
        %1006 = vmatpush.xpose.msra.mxu0 %v989
        %1007 = vmatmul.f32.gmra.mxu0 %v987
        %v1008 = vpop.f32.mrf.mxu0
        %v1009 = vadd.f32 0.0, %v1008
        %1010 = vdwg.mxu0
        %v1011 = vmul.f32 %v1009, 0.35355338
        %s1012 = scalar_lea.vmem %s2, 24
        %v1013 = vld [vmem:[%s1012] sm:$0xff]
        %v1014 = vadd.f32 %v1011, %v1013
        %v1015 = vsel %vm710, %v1014, -inf
        %1016 = vmax.xlane.f32.xlu0 %v1015
        %v1017 = vpop.xlane.xlu0 %1016
        %v1018 = vsub.f32 %v1014, %v1017
        %v1019 = vmul.f32 %v1018, 1.442695
        %v1020 = vpow.pop %v1019
        %v1021 = vsel %vm710, %v1020, 0.0
        %1022 = vadd.xlane.f32.xlu0 %v1021
        %v1023 = vpop.xlane.xlu0 %1022
        %1024 = vrot.lane.b32.xlu0 %v698, 40
        %v1025 = vpop.permute.xlu0 %1024
        %v1028 = vsel %vm710, %v1020, 0
        %1030 = vmatpush.msra.mxu0 0.0
        %1031 = vmatpush.msra.mxu0 0.0
        %1032 = vmatpush.msra.mxu0 0.0
        %1033 = vmatpush.msra.mxu0 0.0
        %1034 = vmatpush.msra.mxu0 0.0
        %1035 = vmatpush.msra.mxu0 0.0
        %1036 = vmatpush.msra.mxu0 0.0
        %1037 = vmatpush.msra.mxu0 0.0
        %1038 = vmatpush.msra.mxu0 0.0
        %1039 = vmatpush.msra.mxu0 0.0
        %1040 = vmatpush.msra.mxu0 0.0
        %1041 = vmatpush.msra.mxu0 0.0
        %1042 = vmatpush.msra.mxu0 0.0
        %1043 = vmatpush.msra.mxu0 0.0
        %1044 = vmatpush.msra.mxu0 0.0
        %1045 = vmatpush.msra.mxu0 %v1025
        %1046 = vmatmul.f32.gmra.mxu0 %v1028
        %v1047 = vpop.f32.mrf.mxu0
        %v1048 = vadd.f32 0.0, %v1047
        %1049 = vdwg.mxu0
        %v1050 = vrcp.pop %v1023
        %v1051 = vmul.f32 %v1048, %v1050
        %v1053 = vsel %vm710, %v1051, 0
        %1055 = vmatpush.msra.mxu0 0.0
        %1056 = vmatpush.msra.mxu0 0.0
        %1057 = vmatpush.msra.mxu0 0.0
        %1058 = vmatpush.msra.mxu0 0.0
        %1059 = vmatpush.msra.mxu0 0.0
        %1060 = vmatpush.msra.mxu0 0.0
        %1061 = vmatpush.msra.mxu0 0.0
        %1062 = vmatpush.msra.mxu0 0.0
        %1063 = vmatpush.msra.mxu0 0.0
        %1064 = vmatpush.msra.mxu0 0.0
        %1065 = vmatpush.msra.mxu0 0.0
        %1066 = vmatpush.msra.mxu0 0.0
        %1067 = vmatpush.msra.mxu0 0.0
        %1068 = vmatpush.msra.mxu0 0.0
        %1069 = vmatpush.msra.mxu0 0.0
        %1070 = vmatpush.msra.mxu0 %v706
        %1071 = vmatmul.f32.gmra.mxu0 %v1053
        %v1072 = vpop.f32.mrf.mxu0
        %v1073 = vadd.f32 0.0, %v1072
        %1074 = vdwg.mxu0
        %v1075 = vadd.f32 %v982, %v1073
        %1077 = vrot.lane.b32.xlu0 %v701, 96
        %v1078 = vpop.permute.xlu0 %1077
        %v1079 = vsel %vm710, %v701, 0
        %v1081 = vsel %vm710, %v1078, 0
        %1083 = vmatpush.xpose.msra.mxu0 0.0
        %1084 = vmatpush.xpose.msra.mxu0 0.0
        %1085 = vmatpush.xpose.msra.mxu0 0.0
        %1086 = vmatpush.xpose.msra.mxu0 0.0
        %1087 = vmatpush.xpose.msra.mxu0 0.0
        %1088 = vmatpush.xpose.msra.mxu0 0.0
        %1089 = vmatpush.xpose.msra.mxu0 0.0
        %1090 = vmatpush.xpose.msra.mxu0 0.0
        %1091 = vmatpush.xpose.msra.mxu0 0.0
        %1092 = vmatpush.xpose.msra.mxu0 0.0
        %1093 = vmatpush.xpose.msra.mxu0 0.0
        %1094 = vmatpush.xpose.msra.mxu0 0.0
        %1095 = vmatpush.xpose.msra.mxu0 0.0
        %1096 = vmatpush.xpose.msra.mxu0 0.0
        %1097 = vmatpush.xpose.msra.mxu0 0.0
        %1098 = vmatpush.xpose.msra.mxu0 %v1081
        %1099 = vmatmul.f32.gmra.mxu0 %v1079
        %v1100 = vpop.f32.mrf.mxu0
        %v1101 = vadd.f32 0.0, %v1100
        %1102 = vdwg.mxu0
        %v1103 = vmul.f32 %v1101, 0.35355338
        %v1104 = vadd.f32 %v1103, %v736
        %v1105 = vsel %vm710, %v1104, -inf
        %1106 = vmax.xlane.f32.xlu0 %v1105
        %v1107 = vpop.xlane.xlu0 %1106
        %v1108 = vsub.f32 %v1104, %v1107
        %v1109 = vmul.f32 %v1108, 1.442695
        %v1110 = vpow.pop %v1109
        %v1111 = vsel %vm710, %v1110, 0.0
        %1112 = vadd.xlane.f32.xlu0 %v1111
        %v1113 = vpop.xlane.xlu0 %1112
        %1114 = vrot.lane.b32.xlu0 %v701, 64
        %v1115 = vpop.permute.xlu0 %1114
        %v1118 = vsel %vm710, %v1110, 0
        %1120 = vmatpush.msra.mxu0 0.0
        %1121 = vmatpush.msra.mxu0 0.0
        %1122 = vmatpush.msra.mxu0 0.0
        %1123 = vmatpush.msra.mxu0 0.0
        %1124 = vmatpush.msra.mxu0 0.0
        %1125 = vmatpush.msra.mxu0 0.0
        %1126 = vmatpush.msra.mxu0 0.0
        %1127 = vmatpush.msra.mxu0 0.0
        %1128 = vmatpush.msra.mxu0 0.0
        %1129 = vmatpush.msra.mxu0 0.0
        %1130 = vmatpush.msra.mxu0 0.0
        %1131 = vmatpush.msra.mxu0 0.0
        %1132 = vmatpush.msra.mxu0 0.0
        %1133 = vmatpush.msra.mxu0 0.0
        %1134 = vmatpush.msra.mxu0 0.0
        %1135 = vmatpush.msra.mxu0 %v1115
        %1136 = vmatmul.f32.gmra.mxu0 %v1118
        %v1137 = vpop.f32.mrf.mxu0
        %v1138 = vadd.f32 0.0, %v1137
        %1139 = vdwg.mxu0
        %v1140 = vrcp.pop %v1113
        %v1141 = vmul.f32 %v1138, %v1140
        %1142 = vrot.lane.b32.xlu0 %v701, 120
        %v1143 = vpop.permute.xlu0 %1142
        %1144 = vrot.lane.b32.xlu0 %v701, 88
        %v1145 = vpop.permute.xlu0 %1144
        %v1146 = vsel %vm710, %v1143, 0
        %v1148 = vsel %vm710, %v1145, 0
        %1150 = vmatpush.xpose.msra.mxu0 0.0
        %1151 = vmatpush.xpose.msra.mxu0 0.0
        %1152 = vmatpush.xpose.msra.mxu0 0.0
        %1153 = vmatpush.xpose.msra.mxu0 0.0
        %1154 = vmatpush.xpose.msra.mxu0 0.0
        %1155 = vmatpush.xpose.msra.mxu0 0.0
        %1156 = vmatpush.xpose.msra.mxu0 0.0
        %1157 = vmatpush.xpose.msra.mxu0 0.0
        %1158 = vmatpush.xpose.msra.mxu0 0.0
        %1159 = vmatpush.xpose.msra.mxu0 0.0
        %1160 = vmatpush.xpose.msra.mxu0 0.0
        %1161 = vmatpush.xpose.msra.mxu0 0.0
        %1162 = vmatpush.xpose.msra.mxu0 0.0
        %1163 = vmatpush.xpose.msra.mxu0 0.0
        %1164 = vmatpush.xpose.msra.mxu0 0.0
        %1165 = vmatpush.xpose.msra.mxu0 %v1148
        %1166 = vmatmul.f32.gmra.mxu0 %v1146
        %v1167 = vpop.f32.mrf.mxu0
        %v1168 = vadd.f32 0.0, %v1167
        %1169 = vdwg.mxu0
        %v1170 = vmul.f32 %v1168, 0.35355338
        %v1171 = vadd.f32 %v1170, %v805
        %v1172 = vsel %vm710, %v1171, -inf
        %1173 = vmax.xlane.f32.xlu0 %v1172
        %v1174 = vpop.xlane.xlu0 %1173
        %v1175 = vsub.f32 %v1171, %v1174
        %v1176 = vmul.f32 %v1175, 1.442695
        %v1177 = vpow.pop %v1176
        %v1178 = vsel %vm710, %v1177, 0.0
        %1179 = vadd.xlane.f32.xlu0 %v1178
        %v1180 = vpop.xlane.xlu0 %1179
        %1181 = vrot.lane.b32.xlu0 %v701, 56
        %v1182 = vpop.permute.xlu0 %1181
        %v1185 = vsel %vm710, %v1177, 0
        %1187 = vmatpush.msra.mxu0 0.0
        %1188 = vmatpush.msra.mxu0 0.0
        %1189 = vmatpush.msra.mxu0 0.0
        %1190 = vmatpush.msra.mxu0 0.0
        %1191 = vmatpush.msra.mxu0 0.0
        %1192 = vmatpush.msra.mxu0 0.0
        %1193 = vmatpush.msra.mxu0 0.0
        %1194 = vmatpush.msra.mxu0 0.0
        %1195 = vmatpush.msra.mxu0 0.0
        %1196 = vmatpush.msra.mxu0 0.0
        %1197 = vmatpush.msra.mxu0 0.0
        %1198 = vmatpush.msra.mxu0 0.0
        %1199 = vmatpush.msra.mxu0 0.0
        %1200 = vmatpush.msra.mxu0 0.0
        %1201 = vmatpush.msra.mxu0 0.0
        %1202 = vmatpush.msra.mxu0 %v1182
        %1203 = vmatmul.f32.gmra.mxu0 %v1185
        %v1204 = vpop.f32.mrf.mxu0
        %v1205 = vadd.f32 0.0, %v1204
        %1206 = vdwg.mxu0
        %v1207 = vrcp.pop %v1180
        %v1208 = vmul.f32 %v1205, %v1207
        %v1210 = vsel %vm710, %v1208, 0
        %1212 = vmatpush.msra.mxu0 0.0
        %1213 = vmatpush.msra.mxu0 0.0
        %1214 = vmatpush.msra.mxu0 0.0
        %1215 = vmatpush.msra.mxu0 0.0
        %1216 = vmatpush.msra.mxu0 0.0
        %1217 = vmatpush.msra.mxu0 0.0
        %1218 = vmatpush.msra.mxu0 0.0
        %1219 = vmatpush.msra.mxu0 0.0
        %1220 = vmatpush.msra.mxu0 0.0
        %1221 = vmatpush.msra.mxu0 0.0
        %1222 = vmatpush.msra.mxu0 0.0
        %1223 = vmatpush.msra.mxu0 0.0
        %1224 = vmatpush.msra.mxu0 0.0
        %1225 = vmatpush.msra.mxu0 0.0
        %1226 = vmatpush.msra.mxu0 0.0
        %1227 = vmatpush.msra.mxu0 %v704
        %1228 = vmatmul.f32.gmra.mxu0 %v1210
        %v1229 = vpop.f32.mrf.mxu0
        %v1230 = vadd.f32 0.0, %v1229
        %1231 = vdwg.mxu0
        %v1233 = vsel %vm710, %v1141, 0
        %1235 = vmatpush.msra.mxu0 0.0
        %1236 = vmatpush.msra.mxu0 0.0
        %1237 = vmatpush.msra.mxu0 0.0
        %1238 = vmatpush.msra.mxu0 0.0
        %1239 = vmatpush.msra.mxu0 0.0
        %1240 = vmatpush.msra.mxu0 0.0
        %1241 = vmatpush.msra.mxu0 0.0
        %1242 = vmatpush.msra.mxu0 0.0
        %1243 = vmatpush.msra.mxu0 0.0
        %1244 = vmatpush.msra.mxu0 0.0
        %1245 = vmatpush.msra.mxu0 0.0
        %1246 = vmatpush.msra.mxu0 0.0
        %1247 = vmatpush.msra.mxu0 0.0
        %1248 = vmatpush.msra.mxu0 0.0
        %1249 = vmatpush.msra.mxu0 0.0
        %1250 = vmatpush.msra.mxu0 %v703
        %1251 = vmatmul.f32.gmra.mxu0 %v1233
        %v1252 = vpop.f32.mrf.mxu0
        %v1253 = vadd.f32 %v1230, %v1252
        %1254 = vdwg.mxu0
        %1255 = vrot.lane.b32.xlu0 %v701, 112
        %v1256 = vpop.permute.xlu0 %1255
        %1257 = vrot.lane.b32.xlu0 %v701, 80
        %v1258 = vpop.permute.xlu0 %1257
        %v1259 = vsel %vm710, %v1256, 0
        %v1261 = vsel %vm710, %v1258, 0
        %1263 = vmatpush.xpose.msra.mxu0 0.0
        %1264 = vmatpush.xpose.msra.mxu0 0.0
        %1265 = vmatpush.xpose.msra.mxu0 0.0
        %1266 = vmatpush.xpose.msra.mxu0 0.0
        %1267 = vmatpush.xpose.msra.mxu0 0.0
        %1268 = vmatpush.xpose.msra.mxu0 0.0
        %1269 = vmatpush.xpose.msra.mxu0 0.0
        %1270 = vmatpush.xpose.msra.mxu0 0.0
        %1271 = vmatpush.xpose.msra.mxu0 0.0
        %1272 = vmatpush.xpose.msra.mxu0 0.0
        %1273 = vmatpush.xpose.msra.mxu0 0.0
        %1274 = vmatpush.xpose.msra.mxu0 0.0
        %1275 = vmatpush.xpose.msra.mxu0 0.0
        %1276 = vmatpush.xpose.msra.mxu0 0.0
        %1277 = vmatpush.xpose.msra.mxu0 0.0
        %1278 = vmatpush.xpose.msra.mxu0 %v1261
        %1279 = vmatmul.f32.gmra.mxu0 %v1259
        %v1280 = vpop.f32.mrf.mxu0
        %v1281 = vadd.f32 0.0, %v1280
        %1282 = vdwg.mxu0
        %v1283 = vmul.f32 %v1281, 0.35355338
        %v1284 = vadd.f32 %v1283, %v920
        %v1285 = vsel %vm710, %v1284, -inf
        %1286 = vmax.xlane.f32.xlu0 %v1285
        %v1287 = vpop.xlane.xlu0 %1286
        %v1288 = vsub.f32 %v1284, %v1287
        %v1289 = vmul.f32 %v1288, 1.442695
        %v1290 = vpow.pop %v1289
        %v1291 = vsel %vm710, %v1290, 0.0
        %1292 = vadd.xlane.f32.xlu0 %v1291
        %v1293 = vpop.xlane.xlu0 %1292
        %1294 = vrot.lane.b32.xlu0 %v701, 48
        %v1295 = vpop.permute.xlu0 %1294
        %v1298 = vsel %vm710, %v1290, 0
        %1300 = vmatpush.msra.mxu0 0.0
        %1301 = vmatpush.msra.mxu0 0.0
        %1302 = vmatpush.msra.mxu0 0.0
        %1303 = vmatpush.msra.mxu0 0.0
        %1304 = vmatpush.msra.mxu0 0.0
        %1305 = vmatpush.msra.mxu0 0.0
        %1306 = vmatpush.msra.mxu0 0.0
        %1307 = vmatpush.msra.mxu0 0.0
        %1308 = vmatpush.msra.mxu0 0.0
        %1309 = vmatpush.msra.mxu0 0.0
        %1310 = vmatpush.msra.mxu0 0.0
        %1311 = vmatpush.msra.mxu0 0.0
        %1312 = vmatpush.msra.mxu0 0.0
        %1313 = vmatpush.msra.mxu0 0.0
        %1314 = vmatpush.msra.mxu0 0.0
        %1315 = vmatpush.msra.mxu0 %v1295
        %1316 = vmatmul.f32.gmra.mxu0 %v1298
        %v1317 = vpop.f32.mrf.mxu0
        %v1318 = vadd.f32 0.0, %v1317
        %1319 = vdwg.mxu0
        %v1320 = vrcp.pop %v1293
        %v1321 = vmul.f32 %v1318, %v1320
        %v1323 = vsel %vm710, %v1321, 0
        %1325 = vmatpush.msra.mxu0 0.0
        %1326 = vmatpush.msra.mxu0 0.0
        %1327 = vmatpush.msra.mxu0 0.0
        %1328 = vmatpush.msra.mxu0 0.0
        %1329 = vmatpush.msra.mxu0 0.0
        %1330 = vmatpush.msra.mxu0 0.0
        %1331 = vmatpush.msra.mxu0 0.0
        %1332 = vmatpush.msra.mxu0 0.0
        %1333 = vmatpush.msra.mxu0 0.0
        %1334 = vmatpush.msra.mxu0 0.0
        %1335 = vmatpush.msra.mxu0 0.0
        %1336 = vmatpush.msra.mxu0 0.0
        %1337 = vmatpush.msra.mxu0 0.0
        %1338 = vmatpush.msra.mxu0 0.0
        %1339 = vmatpush.msra.mxu0 0.0
        %1340 = vmatpush.msra.mxu0 %v705
        %1341 = vmatmul.f32.gmra.mxu0 %v1323
        %v1342 = vpop.f32.mrf.mxu0
        %v1343 = vadd.f32 0.0, %v1342
        %1344 = vdwg.mxu0
        %v1345 = vadd.f32 %v1253, %v1343
        %1346 = vrot.lane.b32.xlu0 %v701, 104
        %v1347 = vpop.permute.xlu0 %1346
        %1348 = vrot.lane.b32.xlu0 %v701, 72
        %v1349 = vpop.permute.xlu0 %1348
        %v1350 = vsel %vm710, %v1347, 0
        %v1352 = vsel %vm710, %v1349, 0
        %1354 = vmatpush.xpose.msra.mxu0 0.0
        %1355 = vmatpush.xpose.msra.mxu0 0.0
        %1356 = vmatpush.xpose.msra.mxu0 0.0
        %1357 = vmatpush.xpose.msra.mxu0 0.0
        %1358 = vmatpush.xpose.msra.mxu0 0.0
        %1359 = vmatpush.xpose.msra.mxu0 0.0
        %1360 = vmatpush.xpose.msra.mxu0 0.0
        %1361 = vmatpush.xpose.msra.mxu0 0.0
        %1362 = vmatpush.xpose.msra.mxu0 0.0
        %1363 = vmatpush.xpose.msra.mxu0 0.0
        %1364 = vmatpush.xpose.msra.mxu0 0.0
        %1365 = vmatpush.xpose.msra.mxu0 0.0
        %1366 = vmatpush.xpose.msra.mxu0 0.0
        %1367 = vmatpush.xpose.msra.mxu0 0.0
        %1368 = vmatpush.xpose.msra.mxu0 0.0
        %1369 = vmatpush.xpose.msra.mxu0 %v1352
        %1370 = vmatmul.f32.gmra.mxu0 %v1350
        %v1371 = vpop.f32.mrf.mxu0
        %v1372 = vadd.f32 0.0, %v1371
        %1373 = vdwg.mxu0
        %v1374 = vmul.f32 %v1372, 0.35355338
        %v1375 = vadd.f32 %v1374, %v1013
        %v1376 = vsel %vm710, %v1375, -inf
        %1377 = vmax.xlane.f32.xlu0 %v1376
        %v1378 = vpop.xlane.xlu0 %1377
        %v1379 = vsub.f32 %v1375, %v1378
        %v1380 = vmul.f32 %v1379, 1.442695
        %v1381 = vpow.pop %v1380
        %v1382 = vsel %vm710, %v1381, 0.0
        %1383 = vadd.xlane.f32.xlu0 %v1382
        %v1384 = vpop.xlane.xlu0 %1383
        %1385 = vrot.lane.b32.xlu0 %v701, 40
        %v1386 = vpop.permute.xlu0 %1385
        %v1389 = vsel %vm710, %v1381, 0
        %1391 = vmatpush.msra.mxu0 0.0
        %1392 = vmatpush.msra.mxu0 0.0
        %1393 = vmatpush.msra.mxu0 0.0
        %1394 = vmatpush.msra.mxu0 0.0
        %1395 = vmatpush.msra.mxu0 0.0
        %1396 = vmatpush.msra.mxu0 0.0
        %1397 = vmatpush.msra.mxu0 0.0
        %1398 = vmatpush.msra.mxu0 0.0
        %1399 = vmatpush.msra.mxu0 0.0
        %1400 = vmatpush.msra.mxu0 0.0
        %1401 = vmatpush.msra.mxu0 0.0
        %1402 = vmatpush.msra.mxu0 0.0
        %1403 = vmatpush.msra.mxu0 0.0
        %1404 = vmatpush.msra.mxu0 0.0
        %1405 = vmatpush.msra.mxu0 0.0
        %1406 = vmatpush.msra.mxu0 %v1386
        %1407 = vmatmul.f32.gmra.mxu0 %v1389
        %v1408 = vpop.f32.mrf.mxu0
        %v1409 = vadd.f32 0.0, %v1408
        %1410 = vdwg.mxu0
        %v1411 = vrcp.pop %v1384
        %v1412 = vmul.f32 %v1409, %v1411
        %v1414 = vsel %vm710, %v1412, 0
        %1416 = vmatpush.msra.mxu0 0.0
        %1417 = vmatpush.msra.mxu0 0.0
        %1418 = vmatpush.msra.mxu0 0.0
        %1419 = vmatpush.msra.mxu0 0.0
        %1420 = vmatpush.msra.mxu0 0.0
        %1421 = vmatpush.msra.mxu0 0.0
        %1422 = vmatpush.msra.mxu0 0.0
        %1423 = vmatpush.msra.mxu0 0.0
        %1424 = vmatpush.msra.mxu0 0.0
        %1425 = vmatpush.msra.mxu0 0.0
        %1426 = vmatpush.msra.mxu0 0.0
        %1427 = vmatpush.msra.mxu0 0.0
        %1428 = vmatpush.msra.mxu0 0.0
        %1429 = vmatpush.msra.mxu0 0.0
        %1430 = vmatpush.msra.mxu0 0.0
        %1431 = vmatpush.msra.mxu0 %v706
        %1432 = vmatmul.f32.gmra.mxu0 %v1414
        %v1433 = vpop.f32.mrf.mxu0
        %v1434 = vadd.f32 0.0, %v1433
        %1435 = vdwg.mxu0
        %v1436 = vadd.f32 %v1345, %v1434
        %v1437 = vadd.f32 %v604, %v1075
        %v1438 = vadd.f32 %v605, %v1436
        %v1439 = vsel %vm606, %v1437, 0.0
        %1440 = vadd.xlane.f32.xlu0 %v1439
        %v1441 = vpop.xlane.xlu0 %1440
        %v1442 = vsel %vm606, %v1438, 0.0
        %1443 = vadd.xlane.f32.xlu0 %v1442
        %v1444 = vpop.xlane.xlu0 %1443
        %v1445 = vmul.f32 %v1441, %v619
        %v1446 = vmul.f32 %v1444, %v619
        %v1447 = vsub.f32 %v1437, %v1445
        %v1448 = vsub.f32 %v1438, %v1446
        %v1449 = vmul.f32 %v1447, %v1447
        %v1450 = vmul.f32 %v1448, %v1448
        %v1451 = vsel %vm606, %v1449, 0.0
        %1452 = vadd.xlane.f32.xlu0 %v1451
        %v1453 = vpop.xlane.xlu0 %1452
        %v1454 = vsel %vm606, %v1450, 0.0
        %1455 = vadd.xlane.f32.xlu0 %v1454
        %v1456 = vpop.xlane.xlu0 %1455
        %v1457 = vmul.f32 %v1453, %v619
        %v1458 = vmul.f32 %v1456, %v619
        %v1459 = vadd.f32 %v1457, 1e-05
        %v1460 = vadd.f32 %v1458, 1e-05
        %v1461 = vrsqrt.pop %v1459
        %v1462 = vmul.f32 %v1461, %v1459
        %v1463 = vmul.f32 %v1462, %v1461
        %v1464 = vmul.f32 0.5, %v1463
        %v1465 = vsub.f32 1.5, %v1464
        %v1466 = vmul.f32 %v1461, %v1465
        %vm1467 = vweird.f32 %v1459
        %vm1468 = vweird.f32 %v1461
        %vm1469 = vmor %vm1467, %vm1468
        %v1470 = vsel %vm1469, %v1461, %v1466
        %v1471 = vrsqrt.pop %v1460
        %v1472 = vmul.f32 %v1471, %v1460
        %v1473 = vmul.f32 %v1472, %v1471
        %v1474 = vmul.f32 0.5, %v1473
        %v1475 = vsub.f32 1.5, %v1474
        %v1476 = vmul.f32 %v1471, %v1475
        %vm1477 = vweird.f32 %v1460
        %vm1478 = vweird.f32 %v1471
        %vm1479 = vmor %vm1477, %vm1478
        %v1480 = vsel %vm1479, %v1471, %v1476
        %v1481 = vmul.f32 %v1447, %v1470
        %v1482 = vmul.f32 %v1448, %v1480
        %v1483 = vld [vmem:[%s529] sm:$0x1]
        %v1485 = vperm.slane %v1483, 0
        %v1487 = vmul.f32 %v1481, %v1485
        %v1488 = vmul.f32 %v1482, %v1485
        %v1489 = vld [vmem:[%s532] sm:$0x1]
        %v1491 = vperm.slane %v1489, 0
        %v1493 = vadd.f32 %v1487, %v1491
        %v1494 = vadd.f32 %v1488, %v1491
        %v1495 = vld [vmem:[%s537] sm:$0xff]
        %v1496 = vld [vmem:[%s537 + $0x8] sm:$0xff]
        %v1497 = vld [vmem:[%s537 + $0x10] sm:$0xff]
        %v1498 = vld [vmem:[%s537 + $0x18] sm:$0xff]
        %v1500 = vsel %vm606, %v1493, 0
        %v1503 = vsel %vm606, %v1494, 0
        %1505 = vmatpush.msra.mxu0 0.0
        %1506 = vmatpush.msra.mxu0 0.0
        %1507 = vmatpush.msra.mxu0 0.0
        %1508 = vmatpush.msra.mxu0 0.0
        %1509 = vmatpush.msra.mxu0 0.0
        %1510 = vmatpush.msra.mxu0 0.0
        %1511 = vmatpush.msra.mxu0 0.0
        %1512 = vmatpush.msra.mxu0 0.0
        %1513 = vmatpush.msra.mxu0 0.0
        %1514 = vmatpush.msra.mxu0 0.0
        %1515 = vmatpush.msra.mxu0 0.0
        %1516 = vmatpush.msra.mxu0 0.0
        %1517 = vmatpush.msra.mxu0 %v1498
        %1518 = vmatpush.msra.mxu0 %v1497
        %1519 = vmatpush.msra.mxu0 %v1496
        %1520 = vmatpush.msra.mxu0 %v1495
        %1521 = vmatmul.f32.gmra.mxu0 %v1500
        %v1522 = vpop.f32.mrf.mxu0
        %v1523 = vadd.f32 0.0, %v1522
        %1524 = vmatmul.f32.gmra.mxu0 %v1503
        %v1525 = vpop.f32.mrf.mxu0
        %v1526 = vadd.f32 0.0, %v1525
        %1527 = vdwg.mxu0
        %v1528 = vmul.f32 %v1523, %v1523
        %v1529 = vmul.f32 %v1526, %v1526
        %v1530 = vmul.f32 %v1523, %v1528
        %v1531 = vmul.f32 %v1526, %v1529
        %v1532 = vmul.f32 %v1530, 0.044715
        %v1533 = vmul.f32 %v1531, 0.044715
        %v1534 = vadd.f32 %v1523, %v1532
        %v1535 = vadd.f32 %v1526, %v1533
        %v1536 = vmul.f32 %v1534, 0.7978846
        %v1537 = vmul.f32 %v1535, 0.7978846
        %v1538 = vtanh.pop %v1536
        %v1539 = vtanh.pop %v1537
        %v1540 = vadd.f32 %v1538, 1.0
        %v1541 = vadd.f32 %v1539, 1.0
        %v1542 = vmul.f32 %v1540, 0.5
        %v1543 = vmul.f32 %v1541, 0.5
        %v1544 = vmul.f32 %v1523, %v1542
        %v1545 = vmul.f32 %v1526, %v1543
        %v1546 = vld [vmem:[%s542] sm:$0xff]
        %v1547 = vld [vmem:[%s542 + $0x8] sm:$0xff]
        %v1548 = vld [vmem:[%s542 + $0x10] sm:$0xff]
        %v1549 = vld [vmem:[%s542 + $0x18] sm:$0xff]
        %v1550 = vld [vmem:[%s542 + $0x20] sm:$0xff]
        %v1551 = vld [vmem:[%s542 + $0x28] sm:$0xff]
        %v1552 = vld [vmem:[%s542 + $0x30] sm:$0xff]
        %v1553 = vld [vmem:[%s542 + $0x38] sm:$0xff]
        %v1554 = vld [vmem:[%s542 + $0x40] sm:$0xff]
        %v1555 = vld [vmem:[%s542 + $0x48] sm:$0xff]
        %v1556 = vld [vmem:[%s542 + $0x50] sm:$0xff]
        %v1557 = vld [vmem:[%s542 + $0x58] sm:$0xff]
        %v1558 = vld [vmem:[%s542 + $0x60] sm:$0xff]
        %v1559 = vld [vmem:[%s542 + $0x68] sm:$0xff]
        %v1560 = vld [vmem:[%s542 + $0x70] sm:$0xff]
        %v1561 = vld [vmem:[%s542 + $0x78] sm:$0xff]
        %1562 = vmatpush.msra.mxu0 %v1561
        %1563 = vmatpush.msra.mxu0 %v1560
        %1564 = vmatpush.msra.mxu0 %v1559
        %1565 = vmatpush.msra.mxu0 %v1558
        %1566 = vmatpush.msra.mxu0 %v1557
        %1567 = vmatpush.msra.mxu0 %v1556
        %1568 = vmatpush.msra.mxu0 %v1555
        %1569 = vmatpush.msra.mxu0 %v1554
        %1570 = vmatpush.msra.mxu0 %v1553
        %1571 = vmatpush.msra.mxu0 %v1552
        %1572 = vmatpush.msra.mxu0 %v1551
        %1573 = vmatpush.msra.mxu0 %v1550
        %1574 = vmatpush.msra.mxu0 %v1549
        %1575 = vmatpush.msra.mxu0 %v1548
        %1576 = vmatpush.msra.mxu0 %v1547
        %1577 = vmatpush.msra.mxu0 %v1546
        %1578 = vmatmul.f32.gmra.mxu0 %v1544
        %v1579 = vpop.f32.mrf.mxu0
        %v1580 = vadd.f32 0.0, %v1579
        %1581 = vmatmul.f32.gmra.mxu0 %v1545
        %v1582 = vpop.f32.mrf.mxu0
        %v1583 = vadd.f32 0.0, %v1582
        %1584 = vdwg.mxu0
        %v1585 = vadd.f32 %v1437, %v1580
        %v1586 = vadd.f32 %v1438, %v1583
        %1587 = vst.msk [vmem:[#allocation2] sm:$0xff] %vm606, %v1585
        %1588 = vst.msk [vmem:[#allocation2 + $0x8] sm:$0xff] %vm606, %v1586
        %p1589 = scmp.eq.s32.totalorder %s25, 1
        // Predicated region
        $region77: #{tpu_custom_call.1} parent=71 // pred_check
          %p1590 = pneg %p1589
        $region78: #{tpu_custom_call.1} parent=71 // pred_check_branch
          %1592 = sbr.rel (%p1590) target = $region80
        $region79: #{tpu_custom_call.1} parent=71 // pred_region
          %v1593 = vsel %vm606, %v1585, 0.0
          %1594 = vadd.xlane.f32.xlu0 %v1593
          %v1595 = vpop.xlane.xlu0 %1594
          %v1596 = vsel %vm606, %v1586, 0.0
          %1597 = vadd.xlane.f32.xlu0 %v1596
          %v1598 = vpop.xlane.xlu0 %1597
          %v1599 = vmul.f32 %v1595, %v619
          %v1600 = vmul.f32 %v1598, %v619
          %v1601 = vsub.f32 %v1585, %v1599
          %v1602 = vsub.f32 %v1586, %v1600
          %v1603 = vmul.f32 %v1601, %v1601
          %v1604 = vmul.f32 %v1602, %v1602
          %v1605 = vsel %vm606, %v1603, 0.0
          %1606 = vadd.xlane.f32.xlu0 %v1605
          %v1607 = vpop.xlane.xlu0 %1606
          %v1608 = vsel %vm606, %v1604, 0.0
          %1609 = vadd.xlane.f32.xlu0 %v1608
          %v1610 = vpop.xlane.xlu0 %1609
          %v1611 = vmul.f32 %v1607, %v619
          %v1612 = vmul.f32 %v1610, %v619
          %v1613 = vadd.f32 %v1611, 1e-05
          %v1614 = vadd.f32 %v1612, 1e-05
          %v1615 = vrsqrt.pop %v1613
          %v1616 = vmul.f32 %v1615, %v1613
          %v1617 = vmul.f32 %v1616, %v1615
          %v1618 = vmul.f32 0.5, %v1617
          %v1619 = vsub.f32 1.5, %v1618
          %v1620 = vmul.f32 %v1615, %v1619
          %vm1621 = vweird.f32 %v1613
          %vm1622 = vweird.f32 %v1615
          %vm1623 = vmor %vm1621, %vm1622
          %v1624 = vsel %vm1623, %v1615, %v1620
          %v1625 = vrsqrt.pop %v1614
          %v1626 = vmul.f32 %v1625, %v1614
          %v1627 = vmul.f32 %v1626, %v1625
          %v1628 = vmul.f32 0.5, %v1627
          %v1629 = vsub.f32 1.5, %v1628
          %v1630 = vmul.f32 %v1625, %v1629
          %vm1631 = vweird.f32 %v1614
          %vm1632 = vweird.f32 %v1625
          %vm1633 = vmor %vm1631, %vm1632
          %v1634 = vsel %vm1633, %v1625, %v1630
          %v1635 = vmul.f32 %v1601, %v1624
          %v1636 = vmul.f32 %v1602, %v1634
          %v1637 = vld [vmem:[%s11] sm:$0x1]
          %v1639 = vperm.slane %v1637, 0
          %v1641 = vmul.f32 %v1635, %v1639
          %v1642 = vmul.f32 %v1636, %v1639
          %v1643 = vld [vmem:[%s12] sm:$0x1]
          %v1645 = vperm.slane %v1643, 0
          %v1647 = vadd.f32 %v1641, %v1645
          %v1648 = vadd.f32 %v1642, %v1645
          %1649 = vst.msk [vmem:[#allocation3] sm:$0xff] %vm606, %v1647
          %1650 = vst.msk [vmem:[#allocation3 + $0x8] sm:$0xff] %vm606, %v1648
        $region80: #{tpu_custom_call.1} parent=71 // pred_fallthru
          _
        // Predicated region
        $region81: #{tpu_custom_call.1} parent=71 // pred_check
          %p1651 = pneg %p351
        $region82: #{tpu_custom_call.1} parent=71 // pred_check_branch
          %1653 = sbr.rel (%p1651) target = $region84
        $region83: #{tpu_custom_call.1} parent=71 // pred_region
          %1655 = vsyncadd [#allocation4], 0
          %s1656 = sshll.u32 [#allocation3], 4
          %s1657 = int_to_ptr.vmem [resolvable:$true] %s1656
          %s1658 = sshll.u32 %s13, 4
          %s1659 = int_to_ptr.hbm [resolvable:$true] %s1658
          %1664 = dma.vmem_to_hbm [thread:$0]  %s1657, 256, %s1659, [#allocation4], 128, 128, 8
        $region84: #{tpu_custom_call.1} parent=71 // pred_fallthru
          _
        // Predicated region
        $region85: #{tpu_custom_call.1} parent=71 // pred_check
          %p1665 = pneg %p351
        $region86: #{tpu_custom_call.1} parent=71 // pred_check_branch
          %1667 = sbr.rel (%p1665) target = $region88
        $region87: #{tpu_custom_call.1} parent=71 // pred_region
          %1669 = dma.done [#allocation4], 256
        $region88: #{tpu_custom_call.1} parent=71 // pred_fallthru
          _
      $region72: #{tpu_custom_call.1} parent=5 // pred_fallthru
        _
      %p1670 = scmp.le.s32.totalorder 2, %s20
      // Predicated region
      $region89: #{tpu_custom_call.1} parent=5 // pred_check
        %p1671 = pneg %p1670
      $region90: #{tpu_custom_call.1} parent=5 // pred_check_branch
        %1673 = sbr.rel (%p1671) target = $region92
      $region91: #{tpu_custom_call.1} parent=5 // pred_region
        %s1674 = ssub.s32 %s20, 2
      $region92: #{tpu_custom_call.1} parent=5 // pred_fallthru
        _
    $region6: #{tpu_custom_call.1} parent=1 // loop_footer
      %s24 = sadd.s32 1, %s20
    $region7: #{tpu_custom_call.1} parent=1 // loop_footer_branch
      %19 = sbr.rel target = $region3
    $region8: #{tpu_custom_call.1} parent=1 // loop_exit
      _
    %1675 = vsyncpa [#allocation4], 1
    %s1676 = scalar_lea.sflag [#allocation4], 1
    %1677 = vsyncpa %s1676, 1

</llo_original>
